<compile_context>
chip_gen: v6e
topology: v6e:2x2x1
jax: 0.10.0
libtpu: 0.0.40
codegen_flags: <defaults>
</compile_context>

<pallas_src>
import jax
import jax.numpy as jnp
from jax.experimental import pallas as pl
from jax.experimental.pallas import tpu as pltpu


C_SQ, C_MID, C_OUT, H, W = 44, 1056, 176, 14, 14
HW = H * W


def se_block_kernel(s_ref, w1t_ref, b1_ref, x_ref, w2_ref, o_ref):
    # squeeze-excite gate: [1,44] @ [44,1056] + [1,1056] -> sigmoid -> [1,1056]
    # (lane-dense: ~9 vregs, not 132)
    s_row = s_ref[...].astype(jnp.bfloat16)                         # [1, 44]
    gate_lin = jnp.dot(s_row, w1t_ref[...],
                       preferred_element_type=jnp.float32) + b1_ref[...]
    gate = jax.nn.sigmoid(gate_lin)                                  # [1, 1056] f32

    # fold the gate into w2:  (w2 * diag(gate)) @ x  ==  w2 @ (gate * x)
    w2_scaled = (w2_ref[...] * gate).astype(jnp.bfloat16)            # [176, 1056]
    x_bf = x_ref[...].astype(jnp.bfloat16)                           # [1056, 196]

    # 1x1 conv (1056 -> 176), no bias: bf16 MXU matmul, f32 accumulation
    o_ref[...] = jnp.dot(w2_scaled, x_bf,
                         preferred_element_type=jnp.float32).astype(o_ref.dtype)


def prepare_weights(w1, b1, w2):
    """One-time weight prep (outside the hot path).
    w1: [1056, 44] and w2: [176, 1056] are the PyTorch 1x1 conv weights with the
    trailing (1,1) squeezed; b1: [1056]."""
    w1t_p = w1.T.astype(jnp.bfloat16)                 # [44, 1056]  (lane-dense gate)
    b1_p = b1.reshape(1, C_MID).astype(jnp.float32)   # [1, 1056]
    w2_p = w2.astype(jnp.bfloat16)                    # [176, 1056] (no padding needed)
    return w1t_p, b1_p, w2_p


def se_block(x374, x377, w1t_p, b1_p, w2_p):
    """x374: [1, 1056, 14, 14] f32 NCHW, x377: [1, 44, 1, 1] f32 NCHW."""
    N, C_in, h, w = x374.shape
    assert N == 1 and C_in == C_MID and h * w == HW
    x_mat = x374.reshape(C_MID, HW)        # free reshape, channel-major
    s_row = x377.reshape(1, C_SQ)          # free reshape

    cost = pl.CostEstimate(flops=73_000_000,
                           transcendentals=C_MID,
                           bytes_accessed=1_435_000)

    out_mat = pl.pallas_call(
        se_block_kernel,
        out_shape=jax.ShapeDtypeStruct((C_OUT, HW), jnp.float32),
        grid=(1,),
        in_specs=[
            pl.BlockSpec((1, C_SQ), lambda i: (0, 0)),        # s:   [1, 44]
            pl.BlockSpec((C_SQ, C_MID), lambda i: (0, 0)),    # w1T: [44, 1056]
            pl.BlockSpec((1, C_MID), lambda i: (0, 0)),       # b1:  [1, 1056]
            pl.BlockSpec((C_MID, HW), lambda i: (0, 0)),      # x:   [1056, 196]
            pl.BlockSpec((C_OUT, C_MID), lambda i: (0, 0)),   # w2:  [176, 1056]
        ],
        out_specs=pl.BlockSpec((C_OUT, HW), lambda i: (0, 0)),
        cost_estimate=cost,
    )(s_row, w1t_p, b1_p, x_mat, w2_p)

    # (C_out, HW) -> NCHW, free reshape (no transpose)
    return out_mat.reshape(1, C_OUT, h, w)


if __name__ == "__main__":
    key = jax.random.PRNGKey(0)
    k_x374, k_x377, k_w1, k_b1, k_w2 = jax.random.split(key, 5)

    # shapes implied by the module's forward pass
    x374 = jax.random.normal(k_x374, (1, C_MID, H, W), dtype=jnp.float32)
    x377 = jax.random.normal(k_x377, (1, C_SQ, 1, 1), dtype=jnp.float32)

    # Conv2d 1x1 weights in PyTorch-native [C_out, C_in] layout
    w1 = jax.random.normal(k_w1, (C_MID, C_SQ), dtype=jnp.float32) * 0.05
    b1 = jax.random.normal(k_b1, (C_MID,), dtype=jnp.float32) * 0.05
    w2 = jax.random.normal(k_w2, (C_OUT, C_MID), dtype=jnp.float32) * 0.05

    w1t_p, b1_p, w2_p = prepare_weights(w1, b1, w2)

    out = jax.jit(se_block)(x374, x377, w1t_p, b1_p, w2_p)
    out = jax.block_until_ready(out)

    # pure-JAX f32 reference (module semantics)
    gate = jax.nn.sigmoid(w1 @ x377[0, :, 0, 0] + b1)                # [1056]
    y = x374 * gate[None, :, None, None]
    ref = jnp.einsum('nchw,oc->nohw', y, w2)
    assert out.shape == (1, C_OUT, H, W)
    # bf16 matmul operands with f32 accumulation -> loose tolerance vs f32 ref
    assert jnp.allclose(out, ref, atol=1e-1, rtol=5e-2), \
        float(jnp.max(jnp.abs(out - ref)))

    print("KERNEL_OK")
</pallas_src>

<mosaic_0001>
module attributes {stable_mosaic.version = 11 : i64} {
  func.func @se_block_kernel(%arg0: i32, %arg1: memref<1x44xf32, #tpu.memory_space<vmem>>, %arg2: memref<44x1056xbf16, #tpu.memory_space<vmem>>, %arg3: memref<1x1056xf32, #tpu.memory_space<vmem>>, %arg4: memref<1056x196xf32, #tpu.memory_space<vmem>>, %arg5: memref<176x1056xbf16, #tpu.memory_space<vmem>>, %arg6: memref<176x196xf32, #tpu.memory_space<vmem>>) attributes {dimension_semantics = [#tpu.dimension_semantics<arbitrary>], iteration_bounds = array<i64: 1>, scalar_prefetch = 0 : i64, scratch_operands = 0 : i64, tpu.core_type = #tpu.core_type<tc>, window_params = [{pipeline_mode = #tpu.pipeline_mode<synchronous>, transform_indices = @transform_0, window_bounds = array<i64: 1, 44>}, {pipeline_mode = #tpu.pipeline_mode<synchronous>, transform_indices = @transform_1, window_bounds = array<i64: 44, 1056>}, {pipeline_mode = #tpu.pipeline_mode<synchronous>, transform_indices = @transform_2, window_bounds = array<i64: 1, 1056>}, {pipeline_mode = #tpu.pipeline_mode<synchronous>, transform_indices = @transform_3, window_bounds = array<i64: 1056, 196>}, {pipeline_mode = #tpu.pipeline_mode<synchronous>, transform_indices = @transform_4, window_bounds = array<i64: 176, 1056>}, {pipeline_mode = #tpu.pipeline_mode<synchronous>, transform_indices = @transform_5, window_bounds = array<i64: 176, 196>}]} {
    %c0 = arith.constant 0 : index
    %c0_0 = arith.constant 0 : index
    %0 = vector.load %arg1[%c0, %c0_0] : memref<1x44xf32, #tpu.memory_space<vmem>>, vector<1x44xf32>
    %1 = arith.truncf %0 : vector<1x44xf32> to vector<1x44xbf16>
    %c0_1 = arith.constant 0 : index
    %c0_2 = arith.constant 0 : index
    %2 = vector.load %arg2[%c0_1, %c0_2] : memref<44x1056xbf16, #tpu.memory_space<vmem>>, vector<44x1056xbf16>
    %cst = arith.constant dense<0.000000e+00> : vector<1x1056xf32>
    %3 = tpu.matmul %1, %2, %cst {dimension_numbers = #tpu.dot_dimension_numbers<[1], [0], [0], [1], [0, 0, 1, 1], [], []>} : vector<1x44xbf16>, vector<44x1056xbf16>, vector<1x1056xf32> -> vector<1x1056xf32>
    %c0_3 = arith.constant 0 : index
    %c0_4 = arith.constant 0 : index
    %4 = vector.load %arg3[%c0_3, %c0_4] : memref<1x1056xf32, #tpu.memory_space<vmem>>, vector<1x1056xf32>
    %5 = arith.addf %3, %4 : vector<1x1056xf32>
    %6 = arith.negf %5 : vector<1x1056xf32>
    %7 = math.exp %6 : vector<1x1056xf32>
    %cst_5 = arith.constant 1.000000e+00 : f32
    %8 = vector.broadcast %cst_5 : f32 to vector<1x1056xf32>
    %9 = arith.addf %8, %7 : vector<1x1056xf32>
    %10 = arith.divf %8, %9 : vector<1x1056xf32>
    %c0_6 = arith.constant 0 : index
    %c0_7 = arith.constant 0 : index
    %11 = vector.load %arg5[%c0_6, %c0_7] : memref<176x1056xbf16, #tpu.memory_space<vmem>>, vector<176x1056xbf16>
    %12 = arith.extf %11 : vector<176x1056xbf16> to vector<176x1056xf32>
    %13 = vector.broadcast %10 : vector<1x1056xf32> to vector<176x1056xf32>
    %14 = arith.mulf %12, %13 : vector<176x1056xf32>
    %15 = arith.truncf %14 : vector<176x1056xf32> to vector<176x1056xbf16>
    %c0_8 = arith.constant 0 : index
    %c0_9 = arith.constant 0 : index
    %16 = vector.load %arg4[%c0_8, %c0_9] : memref<1056x196xf32, #tpu.memory_space<vmem>>, vector<1056x196xf32>
    %17 = arith.truncf %16 : vector<1056x196xf32> to vector<1056x196xbf16>
    %cst_10 = arith.constant dense<0.000000e+00> : vector<176x196xf32>
    %18 = tpu.matmul %15, %17, %cst_10 {dimension_numbers = #tpu.dot_dimension_numbers<[1], [0], [0], [1], [0, 0, 1, 1], [], []>} : vector<176x1056xbf16>, vector<1056x196xbf16>, vector<176x196xf32> -> vector<176x196xf32>
    %c0_11 = arith.constant 0 : index
    %c0_12 = arith.constant 0 : index
    %19 = vector.load %arg6[%c0_11, %c0_12] : memref<176x196xf32, #tpu.memory_space<vmem>>, vector<176x196xf32>
    tpu.vector_store %arg6[%c0_11, %c0_12], %18 {strides = array<i32>} : memref<176x196xf32, #tpu.memory_space<vmem>>, vector<176x196xf32>,
    return
  }
  func.func @transform_0(%arg0: i32) -> (i32, i32) {
    %c0_i32 = arith.constant 0 : i32
    %c0_i32_0 = arith.constant 0 : i32
    %c0_i32_1 = arith.constant 0 : i32
    return %c0_i32, %c0_i32_0 : i32, i32
  }
  func.func @transform_1(%arg0: i32) -> (i32, i32) {
    %c0_i32 = arith.constant 0 : i32
    %c0_i32_0 = arith.constant 0 : i32
    %c0_i32_1 = arith.constant 0 : i32
    return %c0_i32, %c0_i32_0 : i32, i32
  }
  func.func @transform_2(%arg0: i32) -> (i32, i32) {
    %c0_i32 = arith.constant 0 : i32
    %c0_i32_0 = arith.constant 0 : i32
    %c0_i32_1 = arith.constant 0 : i32
    return %c0_i32, %c0_i32_0 : i32, i32
  }
  func.func @transform_3(%arg0: i32) -> (i32, i32) {
    %c0_i32 = arith.constant 0 : i32
    %c0_i32_0 = arith.constant 0 : i32
    %c0_i32_1 = arith.constant 0 : i32
    return %c0_i32, %c0_i32_0 : i32, i32
  }
  func.func @transform_4(%arg0: i32) -> (i32, i32) {
    %c0_i32 = arith.constant 0 : i32
    %c0_i32_0 = arith.constant 0 : i32
    %c0_i32_1 = arith.constant 0 : i32
    return %c0_i32, %c0_i32_0 : i32, i32
  }
  func.func @transform_5(%arg0: i32) -> (i32, i32) {
    %c0_i32 = arith.constant 0 : i32
    %c0_i32_0 = arith.constant 0 : i32
    %c0_i32_1 = arith.constant 0 : i32
    return %c0_i32, %c0_i32_0 : i32, i32
  }
}

</mosaic_0001>

<llo_original>
// kernel: se_block.1
$region0: #{se_block.1}
  #allocation0 [shape = 'u32[]', space=smem, size = 0x4, offset = 0x4, fixed_abs, tag = 'smem constant byte address 0x4 - core index']
  #allocation1 [shape = 'u32[144,128]{1,0:T(1,128)}', space=vmem, size = 0x12000, scoped, tag = 'internal scratch']
  %s0 = inlined_call_operand.vmem [shape: f32[1,44], index: 0, kind: input, shape index: {}]
  %s1 = inlined_call_operand.vmem [shape: bf16[44,1056], index: 1, kind: input, shape index: {}]
  %s2 = inlined_call_operand.vmem [shape: f32[1,1056], index: 2, kind: input, shape index: {}]
  %s3 = inlined_call_operand.vmem [shape: f32[1056,196], index: 3, kind: input, shape index: {}]
  %s4 = inlined_call_operand.vmem [shape: bf16[176,1056], index: 4, kind: input, shape index: {}]
  %s5 = inlined_call_operand.vmem [shape: f32[176,196], index: 5, kind: output, shape index: {}]
  %s6 = sld [smem:[#allocation0]]
  $region30: #{se_block.1} parent=0
    _
  %s8 = ssub.s32 1, %s6
  %s9 = scalar_select 0, %s8, %s6
  // Predicated region
  $region2: #{se_block.1} parent=0 // pred_check
    _
  $region3: #{se_block.1} parent=0 // pred_check_branch
    %11 = sbr.rel (0) target = $region5
  $region4: #{se_block.1} parent=0 // pred_region
    _
  $region5: #{se_block.1} parent=0 // pred_fallthru
    _
  // Predicated region
  $region6: #{se_block.1} parent=0 // pred_check
    _
  $region7: #{se_block.1} parent=0 // pred_check_branch
    %13 = sbr.rel (0) target = $region9
  $region8: #{se_block.1} parent=0 // pred_region
    _
  $region9: #{se_block.1} parent=0 // pred_fallthru
    _
  // Predicated region
  $region10: #{se_block.1} parent=0 // pred_check
    _
  $region11: #{se_block.1} parent=0 // pred_check_branch
    %15 = sbr.rel (0) target = $region13
  $region12: #{se_block.1} parent=0 // pred_region
    _
  $region13: #{se_block.1} parent=0 // pred_fallthru
    _
  // Predicated region
  $region14: #{se_block.1} parent=0 // pred_check
    _
  $region15: #{se_block.1} parent=0 // pred_check_branch
    %17 = sbr.rel (0) target = $region17
  $region16: #{se_block.1} parent=0 // pred_region
    _
  $region17: #{se_block.1} parent=0 // pred_fallthru
    _
  // Predicated region
  $region18: #{se_block.1} parent=0 // pred_check
    _
  $region19: #{se_block.1} parent=0 // pred_check_branch
    %19 = sbr.rel (0) target = $region21
  $region20: #{se_block.1} parent=0 // pred_region
    _
  $region21: #{se_block.1} parent=0 // pred_fallthru
    _
  %v21 = vld [vmem:[%s0] sm:$0x1]
  %v22 = vpack.c.bf16 %v21, %v21
  %v23 = vld [vmem:[%s1] sm:$0xff]
  %v24 = vld [vmem:[%s1 + $0x8] sm:$0xff]
  %v25 = vld [vmem:[%s1 + $0x10] sm:$0xff]
  %v26 = vld [vmem:[%s1 + $0x18] sm:$0xff]
  %v27 = vld [vmem:[%s1 + $0x20] sm:$0xf]
  %v28 = vld [vmem:[%s1 + $0x24] sm:$0xff]
  %v29 = vld [vmem:[%s1 + $0x2c] sm:$0xff]
  %v30 = vld [vmem:[%s1 + $0x34] sm:$0xff]
  %v31 = vld [vmem:[%s1 + $0x3c] sm:$0xff]
  %v32 = vld [vmem:[%s1 + $0x44] sm:$0xf]
  %v33 = vld [vmem:[%s1 + $0x48] sm:$0xff]
  %v34 = vld [vmem:[%s1 + $0x50] sm:$0xff]
  %v35 = vld [vmem:[%s1 + $0x58] sm:$0xff]
  %v36 = vld [vmem:[%s1 + $0x60] sm:$0xff]
  %v37 = vld [vmem:[%s1 + $0x68] sm:$0xf]
  %v38 = vld [vmem:[%s1 + $0x6c] sm:$0xff]
  %v39 = vld [vmem:[%s1 + $0x74] sm:$0xff]
  %v40 = vld [vmem:[%s1 + $0x7c] sm:$0xff]
  %v41 = vld [vmem:[%s1 + $0x84] sm:$0xff]
  %v42 = vld [vmem:[%s1 + $0x8c] sm:$0xf]
  %v43 = vld [vmem:[%s1 + $0x90] sm:$0xff]
  %v44 = vld [vmem:[%s1 + $0x98] sm:$0xff]
  %v45 = vld [vmem:[%s1 + $0xa0] sm:$0xff]
  %v46 = vld [vmem:[%s1 + $0xa8] sm:$0xff]
  %v47 = vld [vmem:[%s1 + $0xb0] sm:$0xf]
  %v48 = vld [vmem:[%s1 + $0xb4] sm:$0x33]
  %v49 = vld [vmem:[%s1 + $0xbc] sm:$0x33]
  %v50 = vld [vmem:[%s1 + $0xc4] sm:$0x33]
  %v51 = vld [vmem:[%s1 + $0xcc] sm:$0x33]
  %v52 = vld [vmem:[%s1 + $0xd4] sm:$0x3]
  %v53 = vld [vmem:[%s2] sm:$0xff]
  %v54 = vld [vmem:[%s2 + $0x8] sm:$0x1]
  %v85 = vunpack.c.l.b16 %v23
  %v86 = vunpack.c.h.b16 %v23
  %v87 = vunpack.c.l.b16 %v24
  %v88 = vunpack.c.h.b16 %v24
  %v89 = vunpack.c.l.b16 %v25
  %v90 = vunpack.c.h.b16 %v25
  %v91 = vunpack.c.l.b16 %v26
  %v92 = vunpack.c.h.b16 %v26
  %v93 = vunpack.c.l.b16 %v27
  %v94 = vunpack.c.l.b16 %v28
  %v95 = vunpack.c.h.b16 %v28
  %v96 = vunpack.c.l.b16 %v29
  %v97 = vunpack.c.h.b16 %v29
  %v98 = vunpack.c.l.b16 %v30
  %v99 = vunpack.c.h.b16 %v30
  %v100 = vunpack.c.l.b16 %v31
  %v101 = vunpack.c.h.b16 %v31
  %v102 = vunpack.c.l.b16 %v32
  %v103 = vunpack.c.l.b16 %v33
  %v104 = vunpack.c.h.b16 %v33
  %v105 = vunpack.c.l.b16 %v34
  %v106 = vunpack.c.h.b16 %v34
  %v107 = vunpack.c.l.b16 %v35
  %v108 = vunpack.c.h.b16 %v35
  %v109 = vunpack.c.l.b16 %v36
  %v110 = vunpack.c.h.b16 %v36
  %v111 = vunpack.c.l.b16 %v37
  %v112 = vunpack.c.l.b16 %v38
  %v113 = vunpack.c.h.b16 %v38
  %v114 = vunpack.c.l.b16 %v39
  %v115 = vunpack.c.h.b16 %v39
  %v116 = vunpack.c.l.b16 %v40
  %v117 = vunpack.c.h.b16 %v40
  %v118 = vunpack.c.l.b16 %v41
  %v119 = vunpack.c.h.b16 %v41
  %v120 = vunpack.c.l.b16 %v42
  %v121 = vunpack.c.l.b16 %v43
  %v122 = vunpack.c.h.b16 %v43
  %v123 = vunpack.c.l.b16 %v44
  %v124 = vunpack.c.h.b16 %v44
  %v125 = vunpack.c.l.b16 %v45
  %v126 = vunpack.c.h.b16 %v45
  %v127 = vunpack.c.l.b16 %v46
  %v128 = vunpack.c.h.b16 %v46
  %v129 = vunpack.c.l.b16 %v47
  %v130 = vunpack.c.l.b16 %v48
  %v131 = vunpack.c.h.b16 %v48
  %v132 = vunpack.c.l.b16 %v49
  %v133 = vunpack.c.h.b16 %v49
  %v134 = vunpack.c.l.b16 %v50
  %v135 = vunpack.c.h.b16 %v50
  %v136 = vunpack.c.l.b16 %v51
  %v137 = vunpack.c.h.b16 %v51
  %v138 = vunpack.c.l.b16 %v52
  %v139 = vpack.c.b16 %v94, %v85
  %v140 = vpack.c.b16 %v95, %v86
  %v141 = vpack.c.b16 %v96, %v87
  %v142 = vpack.c.b16 %v97, %v88
  %v143 = vpack.c.b16 %v98, %v89
  %v144 = vpack.c.b16 %v99, %v90
  %v145 = vpack.c.b16 %v100, %v91
  %v146 = vpack.c.b16 %v101, %v92
  %v147 = vpack.c.b16 %v102, %v93
  %v148 = vpack.c.b16 %v112, %v103
  %v149 = vpack.c.b16 %v113, %v104
  %v150 = vpack.c.b16 %v114, %v105
  %v151 = vpack.c.b16 %v115, %v106
  %v152 = vpack.c.b16 %v116, %v107
  %v153 = vpack.c.b16 %v117, %v108
  %v154 = vpack.c.b16 %v118, %v109
  %v155 = vpack.c.b16 %v119, %v110
  %v156 = vpack.c.b16 %v120, %v111
  %v157 = vpack.c.b16 %v130, %v121
  %v158 = vpack.c.b16 %v131, %v122
  %v159 = vpack.c.b16 %v132, %v123
  %v160 = vpack.c.b16 %v133, %v124
  %v161 = vpack.c.b16 %v134, %v125
  %v162 = vpack.c.b16 %v135, %v126
  %v163 = vpack.c.b16 %v136, %v127
  %v164 = vpack.c.b16 %v137, %v128
  %v165 = vpack.c.b16 %v138, %v129
  %v186 = vlaneseq
  %v187 = vshrl.u32 %v186, 7
  %v188 = vsub.s32 0, %v187
  %v189 = vrot.slane %v53, %v188
  %v190 = vlaneseq
  %v191 = vshrl.u32 %v190, 7
  %v192 = vsub.s32 1, %v191
  %v193 = vrot.slane %v53, %v192
  %v194 = vlaneseq
  %v195 = vshrl.u32 %v194, 7
  %v196 = vsub.s32 2, %v195
  %v197 = vrot.slane %v53, %v196
  %v198 = vlaneseq
  %v199 = vshrl.u32 %v198, 7
  %v200 = vsub.s32 3, %v199
  %v201 = vrot.slane %v53, %v200
  %v202 = vlaneseq
  %v203 = vshrl.u32 %v202, 7
  %v204 = vsub.s32 4, %v203
  %v205 = vrot.slane %v53, %v204
  %v206 = vlaneseq
  %v207 = vshrl.u32 %v206, 7
  %v208 = vsub.s32 5, %v207
  %v209 = vrot.slane %v53, %v208
  %v210 = vlaneseq
  %v211 = vshrl.u32 %v210, 7
  %v212 = vsub.s32 6, %v211
  %v213 = vrot.slane %v53, %v212
  %v214 = vlaneseq
  %v215 = vshrl.u32 %v214, 7
  %v216 = vsub.s32 7, %v215
  %v217 = vrot.slane %v53, %v216
  %v218 = vlaneseq
  %v219 = vshrl.u32 %v218, 7
  %v220 = vsub.s32 0, %v219
  %v221 = vrot.slane %v54, %v220
  %vm231 = vcmask 359424
  %v233 = vsel %vm231, %v22, 0
  %vm235 = vcmask 1045504
  %v237 = vsel %vm235, %v157, 0
  %v240 = vsel %vm235, %v158, 0
  %v243 = vsel %vm235, %v159, 0
  %v246 = vsel %vm235, %v160, 0
  %v249 = vsel %vm235, %v161, 0
  %v252 = vsel %vm235, %v162, 0
  %v255 = vsel %vm235, %v163, 0
  %v258 = vsel %vm235, %v164, 0
  %v261 = vsel %vm235, %v165, 0
  %263 = vmatprep.subr.bf16.mxu0 0
  %264 = vmatpush1.bf16.msra.mxu0 0
  %265 = vmatprep.subr.bf16.mxu0 0
  %266 = vmatpush1.bf16.msra.mxu0 0
  %267 = vmatprep.subr.bf16.mxu0 0
  %268 = vmatpush1.bf16.msra.mxu0 0
  %269 = vmatprep.subr.bf16.mxu0 0
  %270 = vmatpush1.bf16.msra.mxu0 0
  %271 = vmatprep.subr.bf16.mxu0 0
  %272 = vmatpush1.bf16.msra.mxu0 0
  %273 = vmatprep.subr.bf16.mxu0 %v240
  %274 = vmatpush1.bf16.msra.mxu0 %v237
  %275 = vmatprep.subr.bf16.mxu0 %v149
  %276 = vmatpush1.bf16.msra.mxu0 %v148
  %277 = vmatprep.subr.bf16.mxu0 %v140
  %278 = vmatpush1.bf16.msra.mxu0 %v139
  %279 = vmatprep.subr.bf16.mxu0 0
  %280 = vmatpush2.bf16.msra.mxu0 0
  %281 = vmatprep.subr.bf16.mxu0 0
  %282 = vmatpush2.bf16.msra.mxu0 0
  %283 = vmatprep.subr.bf16.mxu0 0
  %284 = vmatpush2.bf16.msra.mxu0 0
  %285 = vmatprep.subr.bf16.mxu0 0
  %286 = vmatpush2.bf16.msra.mxu0 0
  %287 = vmatprep.subr.bf16.mxu0 0
  %288 = vmatpush2.bf16.msra.mxu0 0
  %289 = vmatprep.subr.bf16.mxu0 0
  %290 = vmatpush2.bf16.msra.mxu0 0
  %291 = vmatprep.subr.bf16.mxu0 0
  %292 = vmatpush2.bf16.msra.mxu0 0
  %293 = vmatprep.subr.bf16.mxu0 0
  %294 = vmatpush2.bf16.msra.mxu0 0
  %295 = vmatprep.mubr.bf16.mxu0 0
  %296 = vmatmul.mubr.bf16.gmra.mxu0 %v233
  %v297 = vpop.f32.mrf.mxu0
  %v298 = vadd.f32 %v189, %v297
  %v299 = vpop.f32.mrf.mxu0
  %v300 = vadd.f32 %v193, %v299
  %v301 = vpop.f32.mrf.mxu0
  %v302 = vpop.f32.mrf.mxu0
  %303 = vdwg.mxu0
  %304 = vmatprep.subr.bf16.mxu0 0
  %305 = vmatpush1.bf16.msra.mxu0 0
  %306 = vmatprep.subr.bf16.mxu0 0
  %307 = vmatpush1.bf16.msra.mxu0 0
  %308 = vmatprep.subr.bf16.mxu0 0
  %309 = vmatpush1.bf16.msra.mxu0 0
  %310 = vmatprep.subr.bf16.mxu0 0
  %311 = vmatpush1.bf16.msra.mxu0 0
  %312 = vmatprep.subr.bf16.mxu0 0
  %313 = vmatpush1.bf16.msra.mxu0 0
  %314 = vmatprep.subr.bf16.mxu0 %v246
  %315 = vmatpush1.bf16.msra.mxu0 %v243
  %316 = vmatprep.subr.bf16.mxu0 %v151
  %317 = vmatpush1.bf16.msra.mxu0 %v150
  %318 = vmatprep.subr.bf16.mxu0 %v142
  %319 = vmatpush1.bf16.msra.mxu0 %v141
  %320 = vmatprep.subr.bf16.mxu0 0
  %321 = vmatpush2.bf16.msra.mxu0 0
  %322 = vmatprep.subr.bf16.mxu0 0
  %323 = vmatpush2.bf16.msra.mxu0 0
  %324 = vmatprep.subr.bf16.mxu0 0
  %325 = vmatpush2.bf16.msra.mxu0 0
  %326 = vmatprep.subr.bf16.mxu0 0
  %327 = vmatpush2.bf16.msra.mxu0 0
  %328 = vmatprep.subr.bf16.mxu0 0
  %329 = vmatpush2.bf16.msra.mxu0 0
  %330 = vmatprep.subr.bf16.mxu0 0
  %331 = vmatpush2.bf16.msra.mxu0 0
  %332 = vmatprep.subr.bf16.mxu0 0
  %333 = vmatpush2.bf16.msra.mxu0 0
  %334 = vmatprep.subr.bf16.mxu0 0
  %335 = vmatpush2.bf16.msra.mxu0 0
  %336 = vmatprep.mubr.bf16.mxu0 0
  %337 = vmatmul.mubr.bf16.gmra.mxu0 %v233
  %v338 = vpop.f32.mrf.mxu0
  %v339 = vadd.f32 %v197, %v338
  %v340 = vpop.f32.mrf.mxu0
  %v341 = vadd.f32 %v201, %v340
  %v342 = vpop.f32.mrf.mxu0
  %v343 = vpop.f32.mrf.mxu0
  %344 = vdwg.mxu0
  %345 = vmatprep.subr.bf16.mxu0 0
  %346 = vmatpush1.bf16.msra.mxu0 0
  %347 = vmatprep.subr.bf16.mxu0 0
  %348 = vmatpush1.bf16.msra.mxu0 0
  %349 = vmatprep.subr.bf16.mxu0 0
  %350 = vmatpush1.bf16.msra.mxu0 0
  %351 = vmatprep.subr.bf16.mxu0 0
  %352 = vmatpush1.bf16.msra.mxu0 0
  %353 = vmatprep.subr.bf16.mxu0 0
  %354 = vmatpush1.bf16.msra.mxu0 0
  %355 = vmatprep.subr.bf16.mxu0 %v252
  %356 = vmatpush1.bf16.msra.mxu0 %v249
  %357 = vmatprep.subr.bf16.mxu0 %v153
  %358 = vmatpush1.bf16.msra.mxu0 %v152
  %359 = vmatprep.subr.bf16.mxu0 %v144
  %360 = vmatpush1.bf16.msra.mxu0 %v143
  %361 = vmatprep.subr.bf16.mxu0 0
  %362 = vmatpush2.bf16.msra.mxu0 0
  %363 = vmatprep.subr.bf16.mxu0 0
  %364 = vmatpush2.bf16.msra.mxu0 0
  %365 = vmatprep.subr.bf16.mxu0 0
  %366 = vmatpush2.bf16.msra.mxu0 0
  %367 = vmatprep.subr.bf16.mxu0 0
  %368 = vmatpush2.bf16.msra.mxu0 0
  %369 = vmatprep.subr.bf16.mxu0 0
  %370 = vmatpush2.bf16.msra.mxu0 0
  %371 = vmatprep.subr.bf16.mxu0 0
  %372 = vmatpush2.bf16.msra.mxu0 0
  %373 = vmatprep.subr.bf16.mxu0 0
  %374 = vmatpush2.bf16.msra.mxu0 0
  %375 = vmatprep.subr.bf16.mxu0 0
  %376 = vmatpush2.bf16.msra.mxu0 0
  %377 = vmatprep.mubr.bf16.mxu0 0
  %378 = vmatmul.mubr.bf16.gmra.mxu0 %v233
  %v379 = vpop.f32.mrf.mxu0
  %v380 = vadd.f32 %v205, %v379
  %v381 = vpop.f32.mrf.mxu0
  %v382 = vadd.f32 %v209, %v381
  %v383 = vpop.f32.mrf.mxu0
  %v384 = vpop.f32.mrf.mxu0
  %385 = vdwg.mxu0
  %386 = vmatprep.subr.bf16.mxu0 0
  %387 = vmatpush1.bf16.msra.mxu0 0
  %388 = vmatprep.subr.bf16.mxu0 0
  %389 = vmatpush1.bf16.msra.mxu0 0
  %390 = vmatprep.subr.bf16.mxu0 0
  %391 = vmatpush1.bf16.msra.mxu0 0
  %392 = vmatprep.subr.bf16.mxu0 0
  %393 = vmatpush1.bf16.msra.mxu0 0
  %394 = vmatprep.subr.bf16.mxu0 0
  %395 = vmatpush1.bf16.msra.mxu0 0
  %396 = vmatprep.subr.bf16.mxu0 %v258
  %397 = vmatpush1.bf16.msra.mxu0 %v255
  %398 = vmatprep.subr.bf16.mxu0 %v155
  %399 = vmatpush1.bf16.msra.mxu0 %v154
  %400 = vmatprep.subr.bf16.mxu0 %v146
  %401 = vmatpush1.bf16.msra.mxu0 %v145
  %402 = vmatprep.subr.bf16.mxu0 0
  %403 = vmatpush2.bf16.msra.mxu0 0
  %404 = vmatprep.subr.bf16.mxu0 0
  %405 = vmatpush2.bf16.msra.mxu0 0
  %406 = vmatprep.subr.bf16.mxu0 0
  %407 = vmatpush2.bf16.msra.mxu0 0
  %408 = vmatprep.subr.bf16.mxu0 0
  %409 = vmatpush2.bf16.msra.mxu0 0
  %410 = vmatprep.subr.bf16.mxu0 0
  %411 = vmatpush2.bf16.msra.mxu0 0
  %412 = vmatprep.subr.bf16.mxu0 0
  %413 = vmatpush2.bf16.msra.mxu0 0
  %414 = vmatprep.subr.bf16.mxu0 0
  %415 = vmatpush2.bf16.msra.mxu0 0
  %416 = vmatprep.subr.bf16.mxu0 0
  %417 = vmatpush2.bf16.msra.mxu0 0
  %418 = vmatprep.mubr.bf16.mxu0 0
  %419 = vmatmul.mubr.bf16.gmra.mxu0 %v233
  %v420 = vpop.f32.mrf.mxu0
  %v421 = vadd.f32 %v213, %v420
  %v422 = vpop.f32.mrf.mxu0
  %v423 = vadd.f32 %v217, %v422
  %v424 = vpop.f32.mrf.mxu0
  %v425 = vpop.f32.mrf.mxu0
  %426 = vdwg.mxu0
  %427 = vmatprep.subr.bf16.mxu0 0
  %428 = vmatpush1.bf16.msra.mxu0 0
  %429 = vmatprep.subr.bf16.mxu0 0
  %430 = vmatpush1.bf16.msra.mxu0 0
  %431 = vmatprep.subr.bf16.mxu0 0
  %432 = vmatpush1.bf16.msra.mxu0 0
  %433 = vmatprep.subr.bf16.mxu0 0
  %434 = vmatpush1.bf16.msra.mxu0 0
  %435 = vmatprep.subr.bf16.mxu0 0
  %436 = vmatpush1.bf16.msra.mxu0 0
  %437 = vmatprep.subr.bf16.mxu0 0
  %438 = vmatpush1.bf16.msra.mxu0 %v261
  %439 = vmatprep.subr.bf16.mxu0 0
  %440 = vmatpush1.bf16.msra.mxu0 %v156
  %441 = vmatprep.subr.bf16.mxu0 0
  %442 = vmatpush1.bf16.msra.mxu0 %v147
  %443 = vmatprep.subr.bf16.mxu0 0
  %444 = vmatpush2.bf16.msra.mxu0 0
  %445 = vmatprep.subr.bf16.mxu0 0
  %446 = vmatpush2.bf16.msra.mxu0 0
  %447 = vmatprep.subr.bf16.mxu0 0
  %448 = vmatpush2.bf16.msra.mxu0 0
  %449 = vmatprep.subr.bf16.mxu0 0
  %450 = vmatpush2.bf16.msra.mxu0 0
  %451 = vmatprep.subr.bf16.mxu0 0
  %452 = vmatpush2.bf16.msra.mxu0 0
  %453 = vmatprep.subr.bf16.mxu0 0
  %454 = vmatpush2.bf16.msra.mxu0 0
  %455 = vmatprep.subr.bf16.mxu0 0
  %456 = vmatpush2.bf16.msra.mxu0 0
  %457 = vmatprep.subr.bf16.mxu0 0
  %458 = vmatpush2.bf16.msra.mxu0 0
  %459 = vmatprep.mubr.bf16.mxu0 0
  %460 = vmatmul.mubr.bf16.gmra.mxu0 %v233
  %v461 = vpop.f32.mrf.mxu0
  %v462 = vadd.f32 %v221, %v461
  %v463 = vpop.f32.mrf.mxu0
  %v464 = vpop.f32.mrf.mxu0
  %v465 = vpop.f32.mrf.mxu0
  %466 = vdwg.mxu0
  %v467 = vxor.u32 %v298, 2147483648
  %v468 = vxor.u32 %v300, 2147483648
  %v469 = vxor.u32 %v339, 2147483648
  %v470 = vxor.u32 %v341, 2147483648
  %v471 = vxor.u32 %v380, 2147483648
  %v472 = vxor.u32 %v382, 2147483648
  %v473 = vxor.u32 %v421, 2147483648
  %v474 = vxor.u32 %v423, 2147483648
  %v475 = vxor.u32 %v462, 2147483648
  %v476 = vmul.f32 %v467, 1.442695
  %v477 = vpow.pop %v476
  %v478 = vmul.f32 %v468, 1.442695
  %v479 = vpow.pop %v478
  %v480 = vmul.f32 %v469, 1.442695
  %v481 = vpow.pop %v480
  %v482 = vmul.f32 %v470, 1.442695
  %v483 = vpow.pop %v482
  %v484 = vmul.f32 %v471, 1.442695
  %v485 = vpow.pop %v484
  %v486 = vmul.f32 %v472, 1.442695
  %v487 = vpow.pop %v486
  %v488 = vmul.f32 %v473, 1.442695
  %v489 = vpow.pop %v488
  %v490 = vmul.f32 %v474, 1.442695
  %v491 = vpow.pop %v490
  %v492 = vmul.f32 %v475, 1.442695
  %v493 = vpow.pop %v492
  %v494 = vadd.f32 %v477, 1.0
  %v495 = vadd.f32 %v479, 1.0
  %v496 = vadd.f32 %v481, 1.0
  %v497 = vadd.f32 %v483, 1.0
  %v498 = vadd.f32 %v485, 1.0
  %v499 = vadd.f32 %v487, 1.0
  %v500 = vadd.f32 %v489, 1.0
  %v501 = vadd.f32 %v491, 1.0
  %v502 = vadd.f32 %v493, 1.0
  %v503 = vrcp.pop %v494
  %v504 = vmul.f32 1.0, %v503
  %v505 = vrcp.pop %v495
  %v506 = vmul.f32 1.0, %v505
  %v507 = vrcp.pop %v496
  %v508 = vmul.f32 1.0, %v507
  %v509 = vrcp.pop %v497
  %v510 = vmul.f32 1.0, %v509
  %v511 = vrcp.pop %v498
  %v512 = vmul.f32 1.0, %v511
  %v513 = vrcp.pop %v499
  %v514 = vmul.f32 1.0, %v513
  %v515 = vrcp.pop %v500
  %v516 = vmul.f32 1.0, %v515
  %v517 = vrcp.pop %v501
  %v518 = vmul.f32 1.0, %v517
  %v519 = vrcp.pop %v502
  %v520 = vmul.f32 1.0, %v519
  %v521 = vld [vmem:[%s4] sm:$0xff]
  %v522 = vld [vmem:[%s4 + $0x8] sm:$0xff]
  %v523 = vld [vmem:[%s4 + $0x10] sm:$0xff]
  %v524 = vld [vmem:[%s4 + $0x18] sm:$0xff]
  %v525 = vld [vmem:[%s4 + $0x20] sm:$0xf]
  %v526 = vld [vmem:[%s4 + $0x24] sm:$0xff]
  %v527 = vld [vmem:[%s4 + $0x2c] sm:$0xff]
  %v528 = vld [vmem:[%s4 + $0x34] sm:$0xff]
  %v529 = vld [vmem:[%s4 + $0x3c] sm:$0xff]
  %v530 = vld [vmem:[%s4 + $0x44] sm:$0xf]
  %v531 = vld [vmem:[%s4 + $0x48] sm:$0xff]
  %v532 = vld [vmem:[%s4 + $0x50] sm:$0xff]
  %v533 = vld [vmem:[%s4 + $0x58] sm:$0xff]
  %v534 = vld [vmem:[%s4 + $0x60] sm:$0xff]
  %v535 = vld [vmem:[%s4 + $0x68] sm:$0xf]
  %v536 = vld [vmem:[%s4 + $0x6c] sm:$0xff]
  %v537 = vld [vmem:[%s4 + $0x74] sm:$0xff]
  %v538 = vld [vmem:[%s4 + $0x7c] sm:$0xff]
  %v539 = vld [vmem:[%s4 + $0x84] sm:$0xff]
  %v540 = vld [vmem:[%s4 + $0x8c] sm:$0xf]
  %v541 = vld [vmem:[%s4 + $0x90] sm:$0xff]
  %v542 = vld [vmem:[%s4 + $0x98] sm:$0xff]
  %v543 = vld [vmem:[%s4 + $0xa0] sm:$0xff]
  %v544 = vld [vmem:[%s4 + $0xa8] sm:$0xff]
  %v545 = vld [vmem:[%s4 + $0xb0] sm:$0xf]
  %v546 = vld [vmem:[%s4 + $0xb4] sm:$0xff]
  %v547 = vld [vmem:[%s4 + $0xbc] sm:$0xff]
  %v548 = vld [vmem:[%s4 + $0xc4] sm:$0xff]
  %v549 = vld [vmem:[%s4 + $0xcc] sm:$0xff]
  %v550 = vld [vmem:[%s4 + $0xd4] sm:$0xf]
  %v551 = vld [vmem:[%s4 + $0xd8] sm:$0xff]
  %v552 = vld [vmem:[%s4 + $0xe0] sm:$0xff]
  %v553 = vld [vmem:[%s4 + $0xe8] sm:$0xff]
  %v554 = vld [vmem:[%s4 + $0xf0] sm:$0xff]
  %v555 = vld [vmem:[%s4 + $0xf8] sm:$0xf]
  %v556 = vld [vmem:[%s4 + $0xfc] sm:$0xff]
  %v557 = vld [vmem:[%s4 + $0x104] sm:$0xff]
  %v558 = vld [vmem:[%s4 + $0x10c] sm:$0xff]
  %v559 = vld [vmem:[%s4 + $0x114] sm:$0xff]
  %v560 = vld [vmem:[%s4 + $0x11c] sm:$0xf]
  %v561 = vld [vmem:[%s4 + $0x120] sm:$0xff]
  %v562 = vld [vmem:[%s4 + $0x128] sm:$0xff]
  %v563 = vld [vmem:[%s4 + $0x130] sm:$0xff]
  %v564 = vld [vmem:[%s4 + $0x138] sm:$0xff]
  %v565 = vld [vmem:[%s4 + $0x140] sm:$0xf]
  %v566 = vld [vmem:[%s4 + $0x144] sm:$0xff]
  %v567 = vld [vmem:[%s4 + $0x14c] sm:$0xff]
  %v568 = vld [vmem:[%s4 + $0x154] sm:$0xff]
  %v569 = vld [vmem:[%s4 + $0x15c] sm:$0xff]
  %v570 = vld [vmem:[%s4 + $0x164] sm:$0xf]
  %v571 = vld [vmem:[%s4 + $0x168] sm:$0xff]
  %v572 = vld [vmem:[%s4 + $0x170] sm:$0xff]
  %v573 = vld [vmem:[%s4 + $0x178] sm:$0xff]
  %v574 = vld [vmem:[%s4 + $0x180] sm:$0xff]
  %v575 = vld [vmem:[%s4 + $0x188] sm:$0xf]
  %v576 = vld [vmem:[%s4 + $0x18c] sm:$0xff]
  %v577 = vld [vmem:[%s4 + $0x194] sm:$0xff]
  %v578 = vld [vmem:[%s4 + $0x19c] sm:$0xff]
  %v579 = vld [vmem:[%s4 + $0x1a4] sm:$0xff]
  %v580 = vld [vmem:[%s4 + $0x1ac] sm:$0xf]
  %v581 = vld [vmem:[%s4 + $0x1b0] sm:$0xff]
  %v582 = vld [vmem:[%s4 + $0x1b8] sm:$0xff]
  %v583 = vld [vmem:[%s4 + $0x1c0] sm:$0xff]
  %v584 = vld [vmem:[%s4 + $0x1c8] sm:$0xff]
  %v585 = vld [vmem:[%s4 + $0x1d0] sm:$0xf]
  %v586 = vld [vmem:[%s4 + $0x1d4] sm:$0xff]
  %v587 = vld [vmem:[%s4 + $0x1dc] sm:$0xff]
  %v588 = vld [vmem:[%s4 + $0x1e4] sm:$0xff]
  %v589 = vld [vmem:[%s4 + $0x1ec] sm:$0xff]
  %v590 = vld [vmem:[%s4 + $0x1f4] sm:$0xf]
  %v591 = vld [vmem:[%s4 + $0x1f8] sm:$0xff]
  %v592 = vld [vmem:[%s4 + $0x200] sm:$0xff]
  %v593 = vld [vmem:[%s4 + $0x208] sm:$0xff]
  %v594 = vld [vmem:[%s4 + $0x210] sm:$0xff]
  %v595 = vld [vmem:[%s4 + $0x218] sm:$0xf]
  %v596 = vld [vmem:[%s4 + $0x21c] sm:$0xff]
  %v597 = vld [vmem:[%s4 + $0x224] sm:$0xff]
  %v598 = vld [vmem:[%s4 + $0x22c] sm:$0xff]
  %v599 = vld [vmem:[%s4 + $0x234] sm:$0xff]
  %v600 = vld [vmem:[%s4 + $0x23c] sm:$0xf]
  %v601 = vld [vmem:[%s4 + $0x240] sm:$0xff]
  %v602 = vld [vmem:[%s4 + $0x248] sm:$0xff]
  %v603 = vld [vmem:[%s4 + $0x250] sm:$0xff]
  %v604 = vld [vmem:[%s4 + $0x258] sm:$0xff]
  %v605 = vld [vmem:[%s4 + $0x260] sm:$0xf]
  %v606 = vld [vmem:[%s4 + $0x264] sm:$0xff]
  %v607 = vld [vmem:[%s4 + $0x26c] sm:$0xff]
  %v608 = vld [vmem:[%s4 + $0x274] sm:$0xff]
  %v609 = vld [vmem:[%s4 + $0x27c] sm:$0xff]
  %v610 = vld [vmem:[%s4 + $0x284] sm:$0xf]
  %v611 = vld [vmem:[%s4 + $0x288] sm:$0xff]
  %v612 = vld [vmem:[%s4 + $0x290] sm:$0xff]
  %v613 = vld [vmem:[%s4 + $0x298] sm:$0xff]
  %v614 = vld [vmem:[%s4 + $0x2a0] sm:$0xff]
  %v615 = vld [vmem:[%s4 + $0x2a8] sm:$0xf]
  %v616 = vld [vmem:[%s4 + $0x2ac] sm:$0xff]
  %v617 = vld [vmem:[%s4 + $0x2b4] sm:$0xff]
  %v618 = vld [vmem:[%s4 + $0x2bc] sm:$0xff]
  %v619 = vld [vmem:[%s4 + $0x2c4] sm:$0xff]
  %v620 = vld [vmem:[%s4 + $0x2cc] sm:$0xf]
  %v621 = vld [vmem:[%s4 + $0x2d0] sm:$0xff]
  %v622 = vld [vmem:[%s4 + $0x2d8] sm:$0xff]
  %v623 = vld [vmem:[%s4 + $0x2e0] sm:$0xff]
  %v624 = vld [vmem:[%s4 + $0x2e8] sm:$0xff]
  %v625 = vld [vmem:[%s4 + $0x2f0] sm:$0xf]
  %v626 = vld [vmem:[%s4 + $0x2f4] sm:$0xff]
  %v627 = vld [vmem:[%s4 + $0x2fc] sm:$0xff]
  %v628 = vld [vmem:[%s4 + $0x304] sm:$0xff]
  %v629 = vld [vmem:[%s4 + $0x30c] sm:$0xff]
  %v630 = vld [vmem:[%s4 + $0x314] sm:$0xf]
  %v631 = vunpack.c.l.bf16 %v521
  %v632 = vunpack.c.h.bf16 %v521
  %v633 = vunpack.c.l.bf16 %v522
  %v634 = vunpack.c.h.bf16 %v522
  %v635 = vunpack.c.l.bf16 %v523
  %v636 = vunpack.c.h.bf16 %v523
  %v637 = vunpack.c.l.bf16 %v524
  %v638 = vunpack.c.h.bf16 %v524
  %v639 = vunpack.c.l.bf16 %v525
  %v640 = vunpack.c.l.bf16 %v526
  %v641 = vunpack.c.h.bf16 %v526
  %v642 = vunpack.c.l.bf16 %v527
  %v643 = vunpack.c.h.bf16 %v527
  %v644 = vunpack.c.l.bf16 %v528
  %v645 = vunpack.c.h.bf16 %v528
  %v646 = vunpack.c.l.bf16 %v529
  %v647 = vunpack.c.h.bf16 %v529
  %v648 = vunpack.c.l.bf16 %v530
  %v649 = vunpack.c.l.bf16 %v531
  %v650 = vunpack.c.h.bf16 %v531
  %v651 = vunpack.c.l.bf16 %v532
  %v652 = vunpack.c.h.bf16 %v532
  %v653 = vunpack.c.l.bf16 %v533
  %v654 = vunpack.c.h.bf16 %v533
  %v655 = vunpack.c.l.bf16 %v534
  %v656 = vunpack.c.h.bf16 %v534
  %v657 = vunpack.c.l.bf16 %v535
  %v658 = vunpack.c.l.bf16 %v536
  %v659 = vunpack.c.h.bf16 %v536
  %v660 = vunpack.c.l.bf16 %v537
  %v661 = vunpack.c.h.bf16 %v537
  %v662 = vunpack.c.l.bf16 %v538
  %v663 = vunpack.c.h.bf16 %v538
  %v664 = vunpack.c.l.bf16 %v539
  %v665 = vunpack.c.h.bf16 %v539
  %v666 = vunpack.c.l.bf16 %v540
  %v667 = vunpack.c.l.bf16 %v541
  %v668 = vunpack.c.h.bf16 %v541
  %v669 = vunpack.c.l.bf16 %v542
  %v670 = vunpack.c.h.bf16 %v542
  %v671 = vunpack.c.l.bf16 %v543
  %v672 = vunpack.c.h.bf16 %v543
  %v673 = vunpack.c.l.bf16 %v544
  %v674 = vunpack.c.h.bf16 %v544
  %v675 = vunpack.c.l.bf16 %v545
  %v676 = vunpack.c.l.bf16 %v546
  %v677 = vunpack.c.h.bf16 %v546
  %v678 = vunpack.c.l.bf16 %v547
  %v679 = vunpack.c.h.bf16 %v547
  %v680 = vunpack.c.l.bf16 %v548
  %v681 = vunpack.c.h.bf16 %v548
  %v682 = vunpack.c.l.bf16 %v549
  %v683 = vunpack.c.h.bf16 %v549
  %v684 = vunpack.c.l.bf16 %v550
  %v685 = vunpack.c.l.bf16 %v551
  %v686 = vunpack.c.h.bf16 %v551
  %v687 = vunpack.c.l.bf16 %v552
  %v688 = vunpack.c.h.bf16 %v552
  %v689 = vunpack.c.l.bf16 %v553
  %v690 = vunpack.c.h.bf16 %v553
  %v691 = vunpack.c.l.bf16 %v554
  %v692 = vunpack.c.h.bf16 %v554
  %v693 = vunpack.c.l.bf16 %v555
  %v694 = vunpack.c.l.bf16 %v556
  %v695 = vunpack.c.h.bf16 %v556
  %v696 = vunpack.c.l.bf16 %v557
  %v697 = vunpack.c.h.bf16 %v557
  %v698 = vunpack.c.l.bf16 %v558
  %v699 = vunpack.c.h.bf16 %v558
  %v700 = vunpack.c.l.bf16 %v559
  %v701 = vunpack.c.h.bf16 %v559
  %v702 = vunpack.c.l.bf16 %v560
  %v703 = vunpack.c.l.bf16 %v561
  %v704 = vunpack.c.h.bf16 %v561
  %v705 = vunpack.c.l.bf16 %v562
  %v706 = vunpack.c.h.bf16 %v562
  %v707 = vunpack.c.l.bf16 %v563
  %v708 = vunpack.c.h.bf16 %v563
  %v709 = vunpack.c.l.bf16 %v564
  %v710 = vunpack.c.h.bf16 %v564
  %v711 = vunpack.c.l.bf16 %v565
  %v712 = vunpack.c.l.bf16 %v566
  %v713 = vunpack.c.h.bf16 %v566
  %v714 = vunpack.c.l.bf16 %v567
  %v715 = vunpack.c.h.bf16 %v567
  %v716 = vunpack.c.l.bf16 %v568
  %v717 = vunpack.c.h.bf16 %v568
  %v718 = vunpack.c.l.bf16 %v569
  %v719 = vunpack.c.h.bf16 %v569
  %v720 = vunpack.c.l.bf16 %v570
  %v721 = vunpack.c.l.bf16 %v571
  %v722 = vunpack.c.h.bf16 %v571
  %v723 = vunpack.c.l.bf16 %v572
  %v724 = vunpack.c.h.bf16 %v572
  %v725 = vunpack.c.l.bf16 %v573
  %v726 = vunpack.c.h.bf16 %v573
  %v727 = vunpack.c.l.bf16 %v574
  %v728 = vunpack.c.h.bf16 %v574
  %v729 = vunpack.c.l.bf16 %v575
  %v730 = vunpack.c.l.bf16 %v576
  %v731 = vunpack.c.h.bf16 %v576
  %v732 = vunpack.c.l.bf16 %v577
  %v733 = vunpack.c.h.bf16 %v577
  %v734 = vunpack.c.l.bf16 %v578
  %v735 = vunpack.c.h.bf16 %v578
  %v736 = vunpack.c.l.bf16 %v579
  %v737 = vunpack.c.h.bf16 %v579
  %v738 = vunpack.c.l.bf16 %v580
  %v739 = vunpack.c.l.bf16 %v581
  %v740 = vunpack.c.h.bf16 %v581
  %v741 = vunpack.c.l.bf16 %v582
  %v742 = vunpack.c.h.bf16 %v582
  %v743 = vunpack.c.l.bf16 %v583
  %v744 = vunpack.c.h.bf16 %v583
  %v745 = vunpack.c.l.bf16 %v584
  %v746 = vunpack.c.h.bf16 %v584
  %v747 = vunpack.c.l.bf16 %v585
  %v748 = vunpack.c.l.bf16 %v586
  %v749 = vunpack.c.h.bf16 %v586
  %v750 = vunpack.c.l.bf16 %v587
  %v751 = vunpack.c.h.bf16 %v587
  %v752 = vunpack.c.l.bf16 %v588
  %v753 = vunpack.c.h.bf16 %v588
  %v754 = vunpack.c.l.bf16 %v589
  %v755 = vunpack.c.h.bf16 %v589
  %v756 = vunpack.c.l.bf16 %v590
  %v757 = vunpack.c.l.bf16 %v591
  %v758 = vunpack.c.h.bf16 %v591
  %v759 = vunpack.c.l.bf16 %v592
  %v760 = vunpack.c.h.bf16 %v592
  %v761 = vunpack.c.l.bf16 %v593
  %v762 = vunpack.c.h.bf16 %v593
  %v763 = vunpack.c.l.bf16 %v594
  %v764 = vunpack.c.h.bf16 %v594
  %v765 = vunpack.c.l.bf16 %v595
  %v766 = vunpack.c.l.bf16 %v596
  %v767 = vunpack.c.h.bf16 %v596
  %v768 = vunpack.c.l.bf16 %v597
  %v769 = vunpack.c.h.bf16 %v597
  %v770 = vunpack.c.l.bf16 %v598
  %v771 = vunpack.c.h.bf16 %v598
  %v772 = vunpack.c.l.bf16 %v599
  %v773 = vunpack.c.h.bf16 %v599
  %v774 = vunpack.c.l.bf16 %v600
  %v775 = vunpack.c.l.bf16 %v601
  %v776 = vunpack.c.h.bf16 %v601
  %v777 = vunpack.c.l.bf16 %v602
  %v778 = vunpack.c.h.bf16 %v602
  %v779 = vunpack.c.l.bf16 %v603
  %v780 = vunpack.c.h.bf16 %v603
  %v781 = vunpack.c.l.bf16 %v604
  %v782 = vunpack.c.h.bf16 %v604
  %v783 = vunpack.c.l.bf16 %v605
  %v784 = vunpack.c.l.bf16 %v606
  %v785 = vunpack.c.h.bf16 %v606
  %v786 = vunpack.c.l.bf16 %v607
  %v787 = vunpack.c.h.bf16 %v607
  %v788 = vunpack.c.l.bf16 %v608
  %v789 = vunpack.c.h.bf16 %v608
  %v790 = vunpack.c.l.bf16 %v609
  %v791 = vunpack.c.h.bf16 %v609
  %v792 = vunpack.c.l.bf16 %v610
  %v793 = vunpack.c.l.bf16 %v611
  %v794 = vunpack.c.h.bf16 %v611
  %v795 = vunpack.c.l.bf16 %v612
  %v796 = vunpack.c.h.bf16 %v612
  %v797 = vunpack.c.l.bf16 %v613
  %v798 = vunpack.c.h.bf16 %v613
  %v799 = vunpack.c.l.bf16 %v614
  %v800 = vunpack.c.h.bf16 %v614
  %v801 = vunpack.c.l.bf16 %v615
  %v802 = vunpack.c.l.bf16 %v616
  %v803 = vunpack.c.h.bf16 %v616
  %v804 = vunpack.c.l.bf16 %v617
  %v805 = vunpack.c.h.bf16 %v617
  %v806 = vunpack.c.l.bf16 %v618
  %v807 = vunpack.c.h.bf16 %v618
  %v808 = vunpack.c.l.bf16 %v619
  %v809 = vunpack.c.h.bf16 %v619
  %v810 = vunpack.c.l.bf16 %v620
  %v811 = vunpack.c.l.bf16 %v621
  %v812 = vunpack.c.h.bf16 %v621
  %v813 = vunpack.c.l.bf16 %v622
  %v814 = vunpack.c.h.bf16 %v622
  %v815 = vunpack.c.l.bf16 %v623
  %v816 = vunpack.c.h.bf16 %v623
  %v817 = vunpack.c.l.bf16 %v624
  %v818 = vunpack.c.h.bf16 %v624
  %v819 = vunpack.c.l.bf16 %v625
  %v820 = vunpack.c.l.bf16 %v626
  %v821 = vunpack.c.h.bf16 %v626
  %v822 = vunpack.c.l.bf16 %v627
  %v823 = vunpack.c.h.bf16 %v627
  %v824 = vunpack.c.l.bf16 %v628
  %v825 = vunpack.c.h.bf16 %v628
  %v826 = vunpack.c.l.bf16 %v629
  %v827 = vunpack.c.h.bf16 %v629
  %v828 = vunpack.c.l.bf16 %v630
  %v829 = vlaneseq
  %v830 = vshrl.u32 %v829, 7
  %v831 = vsub.s32 0, %v830
  %v832 = vrot.slane %v504, %v831
  %v833 = vlaneseq
  %v834 = vshrl.u32 %v833, 7
  %v835 = vsub.s32 0, %v834
  %v836 = vrot.slane %v506, %v835
  %v837 = vlaneseq
  %v838 = vshrl.u32 %v837, 7
  %v839 = vsub.s32 0, %v838
  %v840 = vrot.slane %v508, %v839
  %v841 = vlaneseq
  %v842 = vshrl.u32 %v841, 7
  %v843 = vsub.s32 0, %v842
  %v844 = vrot.slane %v510, %v843
  %v845 = vlaneseq
  %v846 = vshrl.u32 %v845, 7
  %v847 = vsub.s32 0, %v846
  %v848 = vrot.slane %v512, %v847
  %v849 = vlaneseq
  %v850 = vshrl.u32 %v849, 7
  %v851 = vsub.s32 0, %v850
  %v852 = vrot.slane %v514, %v851
  %v853 = vlaneseq
  %v854 = vshrl.u32 %v853, 7
  %v855 = vsub.s32 0, %v854
  %v856 = vrot.slane %v516, %v855
  %v857 = vlaneseq
  %v858 = vshrl.u32 %v857, 7
  %v859 = vsub.s32 0, %v858
  %v860 = vrot.slane %v518, %v859
  %v861 = vlaneseq
  %v862 = vshrl.u32 %v861, 7
  %v863 = vsub.s32 0, %v862
  %v864 = vrot.slane %v520, %v863
  %v865 = vmul.f32 %v631, %v832
  %v866 = vmul.f32 %v632, %v836
  %v867 = vmul.f32 %v633, %v840
  %v868 = vmul.f32 %v634, %v844
  %v869 = vmul.f32 %v635, %v848
  %v870 = vmul.f32 %v636, %v852
  %v871 = vmul.f32 %v637, %v856
  %v872 = vmul.f32 %v638, %v860
  %v873 = vmul.f32 %v639, %v864
  %v874 = vmul.f32 %v640, %v832
  %v875 = vmul.f32 %v641, %v836
  %v876 = vmul.f32 %v642, %v840
  %v877 = vmul.f32 %v643, %v844
  %v878 = vmul.f32 %v644, %v848
  %v879 = vmul.f32 %v645, %v852
  %v880 = vmul.f32 %v646, %v856
  %v881 = vmul.f32 %v647, %v860
  %v882 = vmul.f32 %v648, %v864
  %v883 = vmul.f32 %v649, %v832
  %v884 = vmul.f32 %v650, %v836
  %v885 = vmul.f32 %v651, %v840
  %v886 = vmul.f32 %v652, %v844
  %v887 = vmul.f32 %v653, %v848
  %v888 = vmul.f32 %v654, %v852
  %v889 = vmul.f32 %v655, %v856
  %v890 = vmul.f32 %v656, %v860
  %v891 = vmul.f32 %v657, %v864
  %v892 = vmul.f32 %v658, %v832
  %v893 = vmul.f32 %v659, %v836
  %v894 = vmul.f32 %v660, %v840
  %v895 = vmul.f32 %v661, %v844
  %v896 = vmul.f32 %v662, %v848
  %v897 = vmul.f32 %v663, %v852
  %v898 = vmul.f32 %v664, %v856
  %v899 = vmul.f32 %v665, %v860
  %v900 = vmul.f32 %v666, %v864
  %v901 = vmul.f32 %v667, %v832
  %v902 = vmul.f32 %v668, %v836
  %v903 = vmul.f32 %v669, %v840
  %v904 = vmul.f32 %v670, %v844
  %v905 = vmul.f32 %v671, %v848
  %v906 = vmul.f32 %v672, %v852
  %v907 = vmul.f32 %v673, %v856
  %v908 = vmul.f32 %v674, %v860
  %v909 = vmul.f32 %v675, %v864
  %v910 = vmul.f32 %v676, %v832
  %v911 = vmul.f32 %v677, %v836
  %v912 = vmul.f32 %v678, %v840
  %v913 = vmul.f32 %v679, %v844
  %v914 = vmul.f32 %v680, %v848
  %v915 = vmul.f32 %v681, %v852
  %v916 = vmul.f32 %v682, %v856
  %v917 = vmul.f32 %v683, %v860
  %v918 = vmul.f32 %v684, %v864
  %v919 = vmul.f32 %v685, %v832
  %v920 = vmul.f32 %v686, %v836
  %v921 = vmul.f32 %v687, %v840
  %v922 = vmul.f32 %v688, %v844
  %v923 = vmul.f32 %v689, %v848
  %v924 = vmul.f32 %v690, %v852
  %v925 = vmul.f32 %v691, %v856
  %v926 = vmul.f32 %v692, %v860
  %v927 = vmul.f32 %v693, %v864
  %v928 = vmul.f32 %v694, %v832
  %v929 = vmul.f32 %v695, %v836
  %v930 = vmul.f32 %v696, %v840
  %v931 = vmul.f32 %v697, %v844
  %v932 = vmul.f32 %v698, %v848
  %v933 = vmul.f32 %v699, %v852
  %v934 = vmul.f32 %v700, %v856
  %v935 = vmul.f32 %v701, %v860
  %v936 = vmul.f32 %v702, %v864
  %v937 = vmul.f32 %v703, %v832
  %v938 = vmul.f32 %v704, %v836
  %v939 = vmul.f32 %v705, %v840
  %v940 = vmul.f32 %v706, %v844
  %v941 = vmul.f32 %v707, %v848
  %v942 = vmul.f32 %v708, %v852
  %v943 = vmul.f32 %v709, %v856
  %v944 = vmul.f32 %v710, %v860
  %v945 = vmul.f32 %v711, %v864
  %v946 = vmul.f32 %v712, %v832
  %v947 = vmul.f32 %v713, %v836
  %v948 = vmul.f32 %v714, %v840
  %v949 = vmul.f32 %v715, %v844
  %v950 = vmul.f32 %v716, %v848
  %v951 = vmul.f32 %v717, %v852
  %v952 = vmul.f32 %v718, %v856
  %v953 = vmul.f32 %v719, %v860
  %v954 = vmul.f32 %v720, %v864
  %v955 = vmul.f32 %v721, %v832
  %v956 = vmul.f32 %v722, %v836
  %v957 = vmul.f32 %v723, %v840
  %v958 = vmul.f32 %v724, %v844
  %v959 = vmul.f32 %v725, %v848
  %v960 = vmul.f32 %v726, %v852
  %v961 = vmul.f32 %v727, %v856
  %v962 = vmul.f32 %v728, %v860
  %v963 = vmul.f32 %v729, %v864
  %v964 = vmul.f32 %v730, %v832
  %v965 = vmul.f32 %v731, %v836
  %v966 = vmul.f32 %v732, %v840
  %v967 = vmul.f32 %v733, %v844
  %v968 = vmul.f32 %v734, %v848
  %v969 = vmul.f32 %v735, %v852
  %v970 = vmul.f32 %v736, %v856
  %v971 = vmul.f32 %v737, %v860
  %v972 = vmul.f32 %v738, %v864
  %v973 = vmul.f32 %v739, %v832
  %v974 = vmul.f32 %v740, %v836
  %v975 = vmul.f32 %v741, %v840
  %v976 = vmul.f32 %v742, %v844
  %v977 = vmul.f32 %v743, %v848
  %v978 = vmul.f32 %v744, %v852
  %v979 = vmul.f32 %v745, %v856
  %v980 = vmul.f32 %v746, %v860
  %v981 = vmul.f32 %v747, %v864
  %v982 = vmul.f32 %v748, %v832
  %v983 = vmul.f32 %v749, %v836
  %v984 = vmul.f32 %v750, %v840
  %v985 = vmul.f32 %v751, %v844
  %v986 = vmul.f32 %v752, %v848
  %v987 = vmul.f32 %v753, %v852
  %v988 = vmul.f32 %v754, %v856
  %v989 = vmul.f32 %v755, %v860
  %v990 = vmul.f32 %v756, %v864
  %v991 = vmul.f32 %v757, %v832
  %v992 = vmul.f32 %v758, %v836
  %v993 = vmul.f32 %v759, %v840
  %v994 = vmul.f32 %v760, %v844
  %v995 = vmul.f32 %v761, %v848
  %v996 = vmul.f32 %v762, %v852
  %v997 = vmul.f32 %v763, %v856
  %v998 = vmul.f32 %v764, %v860
  %v999 = vmul.f32 %v765, %v864
  %v1000 = vmul.f32 %v766, %v832
  %v1001 = vmul.f32 %v767, %v836
  %v1002 = vmul.f32 %v768, %v840
  %v1003 = vmul.f32 %v769, %v844
  %v1004 = vmul.f32 %v770, %v848
  %v1005 = vmul.f32 %v771, %v852
  %v1006 = vmul.f32 %v772, %v856
  %v1007 = vmul.f32 %v773, %v860
  %v1008 = vmul.f32 %v774, %v864
  %v1009 = vmul.f32 %v775, %v832
  %v1010 = vmul.f32 %v776, %v836
  %v1011 = vmul.f32 %v777, %v840
  %v1012 = vmul.f32 %v778, %v844
  %v1013 = vmul.f32 %v779, %v848
  %v1014 = vmul.f32 %v780, %v852
  %v1015 = vmul.f32 %v781, %v856
  %v1016 = vmul.f32 %v782, %v860
  %v1017 = vmul.f32 %v783, %v864
  %v1018 = vmul.f32 %v784, %v832
  %v1019 = vmul.f32 %v785, %v836
  %v1020 = vmul.f32 %v786, %v840
  %v1021 = vmul.f32 %v787, %v844
  %v1022 = vmul.f32 %v788, %v848
  %v1023 = vmul.f32 %v789, %v852
  %v1024 = vmul.f32 %v790, %v856
  %v1025 = vmul.f32 %v791, %v860
  %v1026 = vmul.f32 %v792, %v864
  %v1027 = vmul.f32 %v793, %v832
  %v1028 = vmul.f32 %v794, %v836
  %v1029 = vmul.f32 %v795, %v840
  %v1030 = vmul.f32 %v796, %v844
  %v1031 = vmul.f32 %v797, %v848
  %v1032 = vmul.f32 %v798, %v852
  %v1033 = vmul.f32 %v799, %v856
  %v1034 = vmul.f32 %v800, %v860
  %v1035 = vmul.f32 %v801, %v864
  %v1036 = vmul.f32 %v802, %v832
  %v1037 = vmul.f32 %v803, %v836
  %v1038 = vmul.f32 %v804, %v840
  %v1039 = vmul.f32 %v805, %v844
  %v1040 = vmul.f32 %v806, %v848
  %v1041 = vmul.f32 %v807, %v852
  %v1042 = vmul.f32 %v808, %v856
  %v1043 = vmul.f32 %v809, %v860
  %v1044 = vmul.f32 %v810, %v864
  %v1045 = vmul.f32 %v811, %v832
  %v1046 = vmul.f32 %v812, %v836
  %v1047 = vmul.f32 %v813, %v840
  %v1048 = vmul.f32 %v814, %v844
  %v1049 = vmul.f32 %v815, %v848
  %v1050 = vmul.f32 %v816, %v852
  %v1051 = vmul.f32 %v817, %v856
  %v1052 = vmul.f32 %v818, %v860
  %v1053 = vmul.f32 %v819, %v864
  %v1054 = vmul.f32 %v820, %v832
  %v1055 = vmul.f32 %v821, %v836
  %v1056 = vmul.f32 %v822, %v840
  %v1057 = vmul.f32 %v823, %v844
  %v1058 = vmul.f32 %v824, %v848
  %v1059 = vmul.f32 %v825, %v852
  %v1060 = vmul.f32 %v826, %v856
  %v1061 = vmul.f32 %v827, %v860
  %v1062 = vmul.f32 %v828, %v864
  %v1063 = vpack.c.bf16 %v874, %v865
  %v1064 = vpack.c.bf16 %v875, %v866
  %v1065 = vpack.c.bf16 %v876, %v867
  %v1066 = vpack.c.bf16 %v877, %v868
  %v1067 = vpack.c.bf16 %v878, %v869
  %v1068 = vpack.c.bf16 %v879, %v870
  %v1069 = vpack.c.bf16 %v880, %v871
  %v1070 = vpack.c.bf16 %v881, %v872
  %v1071 = vpack.c.bf16 %v882, %v873
  %v1072 = vpack.c.bf16 %v892, %v883
  %v1073 = vpack.c.bf16 %v893, %v884
  %v1074 = vpack.c.bf16 %v894, %v885
  %v1075 = vpack.c.bf16 %v895, %v886
  %v1076 = vpack.c.bf16 %v896, %v887
  %v1077 = vpack.c.bf16 %v897, %v888
  %v1078 = vpack.c.bf16 %v898, %v889
  %v1079 = vpack.c.bf16 %v899, %v890
  %v1080 = vpack.c.bf16 %v900, %v891
  %v1081 = vpack.c.bf16 %v910, %v901
  %v1082 = vpack.c.bf16 %v911, %v902
  %v1083 = vpack.c.bf16 %v912, %v903
  %v1084 = vpack.c.bf16 %v913, %v904
  %v1085 = vpack.c.bf16 %v914, %v905
  %v1086 = vpack.c.bf16 %v915, %v906
  %v1087 = vpack.c.bf16 %v916, %v907
  %v1088 = vpack.c.bf16 %v917, %v908
  %v1089 = vpack.c.bf16 %v918, %v909
  %v1090 = vpack.c.bf16 %v928, %v919
  %v1091 = vpack.c.bf16 %v929, %v920
  %v1092 = vpack.c.bf16 %v930, %v921
  %v1093 = vpack.c.bf16 %v931, %v922
  %v1094 = vpack.c.bf16 %v932, %v923
  %v1095 = vpack.c.bf16 %v933, %v924
  %v1096 = vpack.c.bf16 %v934, %v925
  %v1097 = vpack.c.bf16 %v935, %v926
  %v1098 = vpack.c.bf16 %v936, %v927
  %v1099 = vpack.c.bf16 %v946, %v937
  %v1100 = vpack.c.bf16 %v947, %v938
  %v1101 = vpack.c.bf16 %v948, %v939
  %v1102 = vpack.c.bf16 %v949, %v940
  %v1103 = vpack.c.bf16 %v950, %v941
  %v1104 = vpack.c.bf16 %v951, %v942
  %v1105 = vpack.c.bf16 %v952, %v943
  %v1106 = vpack.c.bf16 %v953, %v944
  %v1107 = vpack.c.bf16 %v954, %v945
  %v1108 = vpack.c.bf16 %v964, %v955
  %v1109 = vpack.c.bf16 %v965, %v956
  %v1110 = vpack.c.bf16 %v966, %v957
  %v1111 = vpack.c.bf16 %v967, %v958
  %v1112 = vpack.c.bf16 %v968, %v959
  %v1113 = vpack.c.bf16 %v969, %v960
  %v1114 = vpack.c.bf16 %v970, %v961
  %v1115 = vpack.c.bf16 %v971, %v962
  %v1116 = vpack.c.bf16 %v972, %v963
  %v1117 = vpack.c.bf16 %v982, %v973
  %v1118 = vpack.c.bf16 %v983, %v974
  %v1119 = vpack.c.bf16 %v984, %v975
  %v1120 = vpack.c.bf16 %v985, %v976
  %v1121 = vpack.c.bf16 %v986, %v977
  %v1122 = vpack.c.bf16 %v987, %v978
  %v1123 = vpack.c.bf16 %v988, %v979
  %v1124 = vpack.c.bf16 %v989, %v980
  %v1125 = vpack.c.bf16 %v990, %v981
  %v1126 = vpack.c.bf16 %v1000, %v991
  %v1127 = vpack.c.bf16 %v1001, %v992
  %v1128 = vpack.c.bf16 %v1002, %v993
  %v1129 = vpack.c.bf16 %v1003, %v994
  %v1130 = vpack.c.bf16 %v1004, %v995
  %v1131 = vpack.c.bf16 %v1005, %v996
  %v1132 = vpack.c.bf16 %v1006, %v997
  %v1133 = vpack.c.bf16 %v1007, %v998
  %v1134 = vpack.c.bf16 %v1008, %v999
  %v1135 = vpack.c.bf16 %v1018, %v1009
  %v1136 = vpack.c.bf16 %v1019, %v1010
  %v1137 = vpack.c.bf16 %v1020, %v1011
  %v1138 = vpack.c.bf16 %v1021, %v1012
  %v1139 = vpack.c.bf16 %v1022, %v1013
  %v1140 = vpack.c.bf16 %v1023, %v1014
  %v1141 = vpack.c.bf16 %v1024, %v1015
  %v1142 = vpack.c.bf16 %v1025, %v1016
  %v1143 = vpack.c.bf16 %v1026, %v1017
  %v1144 = vpack.c.bf16 %v1036, %v1027
  %v1145 = vpack.c.bf16 %v1037, %v1028
  %v1146 = vpack.c.bf16 %v1038, %v1029
  %v1147 = vpack.c.bf16 %v1039, %v1030
  %v1148 = vpack.c.bf16 %v1040, %v1031
  %v1149 = vpack.c.bf16 %v1041, %v1032
  %v1150 = vpack.c.bf16 %v1042, %v1033
  %v1151 = vpack.c.bf16 %v1043, %v1034
  %v1152 = vpack.c.bf16 %v1044, %v1035
  %v1153 = vpack.c.bf16 %v1054, %v1045
  %v1154 = vpack.c.bf16 %v1055, %v1046
  %v1155 = vpack.c.bf16 %v1056, %v1047
  %v1156 = vpack.c.bf16 %v1057, %v1048
  %v1157 = vpack.c.bf16 %v1058, %v1049
  %v1158 = vpack.c.bf16 %v1059, %v1050
  %v1159 = vpack.c.bf16 %v1060, %v1051
  %v1160 = vpack.c.bf16 %v1061, %v1052
  %v1161 = vpack.c.bf16 %v1062, %v1053
  %v1162 = vld [vmem:[%s3] sm:$0xff]
  %v1163 = vld [vmem:[%s3 + $0x8] sm:$0xff]
  %v1164 = vld [vmem:[%s3 + $0x10] sm:$0xff]
  %v1165 = vld [vmem:[%s3 + $0x18] sm:$0xff]
  %v1166 = vld [vmem:[%s3 + $0x20] sm:$0xff]
  %v1167 = vld [vmem:[%s3 + $0x28] sm:$0xff]
  %v1168 = vld [vmem:[%s3 + $0x30] sm:$0xff]
  %v1169 = vld [vmem:[%s3 + $0x38] sm:$0xff]
  %v1170 = vld [vmem:[%s3 + $0x40] sm:$0xff]
  %v1171 = vld [vmem:[%s3 + $0x48] sm:$0xff]
  %v1172 = vld [vmem:[%s3 + $0x50] sm:$0xff]
  %v1173 = vld [vmem:[%s3 + $0x58] sm:$0xff]
  %v1174 = vld [vmem:[%s3 + $0x60] sm:$0xff]
  %v1175 = vld [vmem:[%s3 + $0x68] sm:$0xff]
  %v1176 = vld [vmem:[%s3 + $0x70] sm:$0xff]
  %v1177 = vld [vmem:[%s3 + $0x78] sm:$0xff]
  %v1178 = vld [vmem:[%s3 + $0x80] sm:$0xff]
  %v1179 = vld [vmem:[%s3 + $0x88] sm:$0xff]
  %v1180 = vld [vmem:[%s3 + $0x90] sm:$0xff]
  %v1181 = vld [vmem:[%s3 + $0x98] sm:$0xff]
  %v1182 = vld [vmem:[%s3 + $0xa0] sm:$0xff]
  %v1183 = vld [vmem:[%s3 + $0xa8] sm:$0xff]
  %v1184 = vld [vmem:[%s3 + $0xb0] sm:$0xff]
  %v1185 = vld [vmem:[%s3 + $0xb8] sm:$0xff]
  %v1186 = vld [vmem:[%s3 + $0xc0] sm:$0xff]
  %v1187 = vld [vmem:[%s3 + $0xc8] sm:$0xff]
  %v1188 = vld [vmem:[%s3 + $0xd0] sm:$0xff]
  %v1189 = vld [vmem:[%s3 + $0xd8] sm:$0xff]
  %v1190 = vld [vmem:[%s3 + $0xe0] sm:$0xff]
  %v1191 = vld [vmem:[%s3 + $0xe8] sm:$0xff]
  %v1192 = vld [vmem:[%s3 + $0xf0] sm:$0xff]
  %v1193 = vld [vmem:[%s3 + $0xf8] sm:$0xff]
  %v1194 = vld [vmem:[%s3 + $0x100] sm:$0xff]
  %v1195 = vld [vmem:[%s3 + $0x108] sm:$0xff]
  %v1196 = vld [vmem:[%s3 + $0x110] sm:$0xff]
  %v1197 = vld [vmem:[%s3 + $0x118] sm:$0xff]
  %v1198 = vld [vmem:[%s3 + $0x120] sm:$0xff]
  %v1199 = vld [vmem:[%s3 + $0x128] sm:$0xff]
  %v1200 = vld [vmem:[%s3 + $0x130] sm:$0xff]
  %v1201 = vld [vmem:[%s3 + $0x138] sm:$0xff]
  %v1202 = vld [vmem:[%s3 + $0x140] sm:$0xff]
  %v1203 = vld [vmem:[%s3 + $0x148] sm:$0xff]
  %v1204 = vld [vmem:[%s3 + $0x150] sm:$0xff]
  %v1205 = vld [vmem:[%s3 + $0x158] sm:$0xff]
  %v1206 = vld [vmem:[%s3 + $0x160] sm:$0xff]
  %v1207 = vld [vmem:[%s3 + $0x168] sm:$0xff]
  %v1208 = vld [vmem:[%s3 + $0x170] sm:$0xff]
  %v1209 = vld [vmem:[%s3 + $0x178] sm:$0xff]
  %v1210 = vld [vmem:[%s3 + $0x180] sm:$0xff]
  %v1211 = vld [vmem:[%s3 + $0x188] sm:$0xff]
  %v1212 = vld [vmem:[%s3 + $0x190] sm:$0xff]
  %v1213 = vld [vmem:[%s3 + $0x198] sm:$0xff]
  %v1214 = vld [vmem:[%s3 + $0x1a0] sm:$0xff]
  %v1215 = vld [vmem:[%s3 + $0x1a8] sm:$0xff]
  %v1216 = vld [vmem:[%s3 + $0x1b0] sm:$0xff]
  %v1217 = vld [vmem:[%s3 + $0x1b8] sm:$0xff]
  %v1218 = vld [vmem:[%s3 + $0x1c0] sm:$0xff]
  %v1219 = vld [vmem:[%s3 + $0x1c8] sm:$0xff]
  %v1220 = vld [vmem:[%s3 + $0x1d0] sm:$0xff]
  %v1221 = vld [vmem:[%s3 + $0x1d8] sm:$0xff]
  %v1222 = vld [vmem:[%s3 + $0x1e0] sm:$0xff]
  %v1223 = vld [vmem:[%s3 + $0x1e8] sm:$0xff]
  %v1224 = vld [vmem:[%s3 + $0x1f0] sm:$0xff]
  %v1225 = vld [vmem:[%s3 + $0x1f8] sm:$0xff]
  %v1226 = vld [vmem:[%s3 + $0x200] sm:$0xff]
  %v1227 = vld [vmem:[%s3 + $0x208] sm:$0xff]
  %v1228 = vld [vmem:[%s3 + $0x210] sm:$0xff]
  %v1229 = vld [vmem:[%s3 + $0x218] sm:$0xff]
  %v1230 = vld [vmem:[%s3 + $0x220] sm:$0xff]
  %v1231 = vld [vmem:[%s3 + $0x228] sm:$0xff]
  %v1232 = vld [vmem:[%s3 + $0x230] sm:$0xff]
  %v1233 = vld [vmem:[%s3 + $0x238] sm:$0xff]
  %v1234 = vld [vmem:[%s3 + $0x240] sm:$0xff]
  %v1235 = vld [vmem:[%s3 + $0x248] sm:$0xff]
  %v1236 = vld [vmem:[%s3 + $0x250] sm:$0xff]
  %v1237 = vld [vmem:[%s3 + $0x258] sm:$0xff]
  %v1238 = vld [vmem:[%s3 + $0x260] sm:$0xff]
  %v1239 = vld [vmem:[%s3 + $0x268] sm:$0xff]
  %v1240 = vld [vmem:[%s3 + $0x270] sm:$0xff]
  %v1241 = vld [vmem:[%s3 + $0x278] sm:$0xff]
  %v1242 = vld [vmem:[%s3 + $0x280] sm:$0xff]
  %v1243 = vld [vmem:[%s3 + $0x288] sm:$0xff]
  %v1244 = vld [vmem:[%s3 + $0x290] sm:$0xff]
  %v1245 = vld [vmem:[%s3 + $0x298] sm:$0xff]
  %v1246 = vld [vmem:[%s3 + $0x2a0] sm:$0xff]
  %v1247 = vld [vmem:[%s3 + $0x2a8] sm:$0xff]
  %v1248 = vld [vmem:[%s3 + $0x2b0] sm:$0xff]
  %v1249 = vld [vmem:[%s3 + $0x2b8] sm:$0xff]
  %v1250 = vld [vmem:[%s3 + $0x2c0] sm:$0xff]
  %v1251 = vld [vmem:[%s3 + $0x2c8] sm:$0xff]
  %v1252 = vld [vmem:[%s3 + $0x2d0] sm:$0xff]
  %v1253 = vld [vmem:[%s3 + $0x2d8] sm:$0xff]
  %v1254 = vld [vmem:[%s3 + $0x2e0] sm:$0xff]
  %v1255 = vld [vmem:[%s3 + $0x2e8] sm:$0xff]
  %v1256 = vld [vmem:[%s3 + $0x2f0] sm:$0xff]
  %v1257 = vld [vmem:[%s3 + $0x2f8] sm:$0xff]
  %v1258 = vld [vmem:[%s3 + $0x300] sm:$0xff]
  %v1259 = vld [vmem:[%s3 + $0x308] sm:$0xff]
  %v1260 = vld [vmem:[%s3 + $0x310] sm:$0xff]
  %v1261 = vld [vmem:[%s3 + $0x318] sm:$0xff]
  %v1262 = vld [vmem:[%s3 + $0x320] sm:$0xff]
  %v1263 = vld [vmem:[%s3 + $0x328] sm:$0xff]
  %v1264 = vld [vmem:[%s3 + $0x330] sm:$0xff]
  %v1265 = vld [vmem:[%s3 + $0x338] sm:$0xff]
  %v1266 = vld [vmem:[%s3 + $0x340] sm:$0xff]
  %v1267 = vld [vmem:[%s3 + $0x348] sm:$0xff]
  %v1268 = vld [vmem:[%s3 + $0x350] sm:$0xff]
  %v1269 = vld [vmem:[%s3 + $0x358] sm:$0xff]
  %v1270 = vld [vmem:[%s3 + $0x360] sm:$0xff]
  %v1271 = vld [vmem:[%s3 + $0x368] sm:$0xff]
  %v1272 = vld [vmem:[%s3 + $0x370] sm:$0xff]
  %v1273 = vld [vmem:[%s3 + $0x378] sm:$0xff]
  %v1274 = vld [vmem:[%s3 + $0x380] sm:$0xff]
  %v1275 = vld [vmem:[%s3 + $0x388] sm:$0xff]
  %v1276 = vld [vmem:[%s3 + $0x390] sm:$0xff]
  %v1277 = vld [vmem:[%s3 + $0x398] sm:$0xff]
  %v1278 = vld [vmem:[%s3 + $0x3a0] sm:$0xff]
  %v1279 = vld [vmem:[%s3 + $0x3a8] sm:$0xff]
  %v1280 = vld [vmem:[%s3 + $0x3b0] sm:$0xff]
  %v1281 = vld [vmem:[%s3 + $0x3b8] sm:$0xff]
  %v1282 = vld [vmem:[%s3 + $0x3c0] sm:$0xff]
  %v1283 = vld [vmem:[%s3 + $0x3c8] sm:$0xff]
  %v1284 = vld [vmem:[%s3 + $0x3d0] sm:$0xff]
  %v1285 = vld [vmem:[%s3 + $0x3d8] sm:$0xff]
  %v1286 = vld [vmem:[%s3 + $0x3e0] sm:$0xff]
  %v1287 = vld [vmem:[%s3 + $0x3e8] sm:$0xff]
  %v1288 = vld [vmem:[%s3 + $0x3f0] sm:$0xff]
  %v1289 = vld [vmem:[%s3 + $0x3f8] sm:$0xff]
  %v1290 = vld [vmem:[%s3 + $0x400] sm:$0xff]
  %v1291 = vld [vmem:[%s3 + $0x408] sm:$0xff]
  %v1292 = vld [vmem:[%s3 + $0x410] sm:$0xff]
  %v1293 = vld [vmem:[%s3 + $0x418] sm:$0xff]
  %v1294 = vld [vmem:[%s3 + $0x420] sm:$0xff]
  %v1295 = vld [vmem:[%s3 + $0x428] sm:$0xff]
  %v1296 = vld [vmem:[%s3 + $0x430] sm:$0xff]
  %v1297 = vld [vmem:[%s3 + $0x438] sm:$0xff]
  %v1298 = vld [vmem:[%s3 + $0x440] sm:$0xff]
  %v1299 = vld [vmem:[%s3 + $0x448] sm:$0xff]
  %v1300 = vld [vmem:[%s3 + $0x450] sm:$0xff]
  %v1301 = vld [vmem:[%s3 + $0x458] sm:$0xff]
  %v1302 = vld [vmem:[%s3 + $0x460] sm:$0xff]
  %v1303 = vld [vmem:[%s3 + $0x468] sm:$0xff]
  %v1304 = vld [vmem:[%s3 + $0x470] sm:$0xff]
  %v1305 = vld [vmem:[%s3 + $0x478] sm:$0xff]
  %v1306 = vld [vmem:[%s3 + $0x480] sm:$0xff]
  %v1307 = vld [vmem:[%s3 + $0x488] sm:$0xff]
  %v1308 = vld [vmem:[%s3 + $0x490] sm:$0xff]
  %v1309 = vld [vmem:[%s3 + $0x498] sm:$0xff]
  %v1310 = vld [vmem:[%s3 + $0x4a0] sm:$0xff]
  %v1311 = vld [vmem:[%s3 + $0x4a8] sm:$0xff]
  %v1312 = vld [vmem:[%s3 + $0x4b0] sm:$0xff]
  %v1313 = vld [vmem:[%s3 + $0x4b8] sm:$0xff]
  %v1314 = vld [vmem:[%s3 + $0x4c0] sm:$0xff]
  %v1315 = vld [vmem:[%s3 + $0x4c8] sm:$0xff]
  %v1316 = vld [vmem:[%s3 + $0x4d0] sm:$0xff]
  %v1317 = vld [vmem:[%s3 + $0x4d8] sm:$0xff]
  %v1318 = vld [vmem:[%s3 + $0x4e0] sm:$0xff]
  %v1319 = vld [vmem:[%s3 + $0x4e8] sm:$0xff]
  %v1320 = vld [vmem:[%s3 + $0x4f0] sm:$0xff]
  %v1321 = vld [vmem:[%s3 + $0x4f8] sm:$0xff]
  %v1322 = vld [vmem:[%s3 + $0x500] sm:$0xff]
  %v1323 = vld [vmem:[%s3 + $0x508] sm:$0xff]
  %v1324 = vld [vmem:[%s3 + $0x510] sm:$0xff]
  %v1325 = vld [vmem:[%s3 + $0x518] sm:$0xff]
  %v1326 = vld [vmem:[%s3 + $0x520] sm:$0xff]
  %v1327 = vld [vmem:[%s3 + $0x528] sm:$0xff]
  %v1328 = vld [vmem:[%s3 + $0x530] sm:$0xff]
  %v1329 = vld [vmem:[%s3 + $0x538] sm:$0xff]
  %v1330 = vld [vmem:[%s3 + $0x540] sm:$0xff]
  %v1331 = vld [vmem:[%s3 + $0x548] sm:$0xff]
  %v1332 = vld [vmem:[%s3 + $0x550] sm:$0xff]
  %v1333 = vld [vmem:[%s3 + $0x558] sm:$0xff]
  %v1334 = vld [vmem:[%s3 + $0x560] sm:$0xff]
  %v1335 = vld [vmem:[%s3 + $0x568] sm:$0xff]
  %v1336 = vld [vmem:[%s3 + $0x570] sm:$0xff]
  %v1337 = vld [vmem:[%s3 + $0x578] sm:$0xff]
  %v1338 = vld [vmem:[%s3 + $0x580] sm:$0xff]
  %v1339 = vld [vmem:[%s3 + $0x588] sm:$0xff]
  %v1340 = vld [vmem:[%s3 + $0x590] sm:$0xff]
  %v1341 = vld [vmem:[%s3 + $0x598] sm:$0xff]
  %v1342 = vld [vmem:[%s3 + $0x5a0] sm:$0xff]
  %v1343 = vld [vmem:[%s3 + $0x5a8] sm:$0xff]
  %v1344 = vld [vmem:[%s3 + $0x5b0] sm:$0xff]
  %v1345 = vld [vmem:[%s3 + $0x5b8] sm:$0xff]
  %v1346 = vld [vmem:[%s3 + $0x5c0] sm:$0xff]
  %v1347 = vld [vmem:[%s3 + $0x5c8] sm:$0xff]
  %v1348 = vld [vmem:[%s3 + $0x5d0] sm:$0xff]
  %v1349 = vld [vmem:[%s3 + $0x5d8] sm:$0xff]
  %v1350 = vld [vmem:[%s3 + $0x5e0] sm:$0xff]
  %v1351 = vld [vmem:[%s3 + $0x5e8] sm:$0xff]
  %v1352 = vld [vmem:[%s3 + $0x5f0] sm:$0xff]
  %v1353 = vld [vmem:[%s3 + $0x5f8] sm:$0xff]
  %v1354 = vld [vmem:[%s3 + $0x600] sm:$0xff]
  %v1355 = vld [vmem:[%s3 + $0x608] sm:$0xff]
  %v1356 = vld [vmem:[%s3 + $0x610] sm:$0xff]
  %v1357 = vld [vmem:[%s3 + $0x618] sm:$0xff]
  %v1358 = vld [vmem:[%s3 + $0x620] sm:$0xff]
  %v1359 = vld [vmem:[%s3 + $0x628] sm:$0xff]
  %v1360 = vld [vmem:[%s3 + $0x630] sm:$0xff]
  %v1361 = vld [vmem:[%s3 + $0x638] sm:$0xff]
  %v1362 = vld [vmem:[%s3 + $0x640] sm:$0xff]
  %v1363 = vld [vmem:[%s3 + $0x648] sm:$0xff]
  %v1364 = vld [vmem:[%s3 + $0x650] sm:$0xff]
  %v1365 = vld [vmem:[%s3 + $0x658] sm:$0xff]
  %v1366 = vld [vmem:[%s3 + $0x660] sm:$0xff]
  %v1367 = vld [vmem:[%s3 + $0x668] sm:$0xff]
  %v1368 = vld [vmem:[%s3 + $0x670] sm:$0xff]
  %v1369 = vld [vmem:[%s3 + $0x678] sm:$0xff]
  %v1370 = vld [vmem:[%s3 + $0x680] sm:$0xff]
  %v1371 = vld [vmem:[%s3 + $0x688] sm:$0xff]
  %v1372 = vld [vmem:[%s3 + $0x690] sm:$0xff]
  %v1373 = vld [vmem:[%s3 + $0x698] sm:$0xff]
  %v1374 = vld [vmem:[%s3 + $0x6a0] sm:$0xff]
  %v1375 = vld [vmem:[%s3 + $0x6a8] sm:$0xff]
  %v1376 = vld [vmem:[%s3 + $0x6b0] sm:$0xff]
  %v1377 = vld [vmem:[%s3 + $0x6b8] sm:$0xff]
  %v1378 = vld [vmem:[%s3 + $0x6c0] sm:$0xff]
  %v1379 = vld [vmem:[%s3 + $0x6c8] sm:$0xff]
  %v1380 = vld [vmem:[%s3 + $0x6d0] sm:$0xff]
  %v1381 = vld [vmem:[%s3 + $0x6d8] sm:$0xff]
  %v1382 = vld [vmem:[%s3 + $0x6e0] sm:$0xff]
  %v1383 = vld [vmem:[%s3 + $0x6e8] sm:$0xff]
  %v1384 = vld [vmem:[%s3 + $0x6f0] sm:$0xff]
  %v1385 = vld [vmem:[%s3 + $0x6f8] sm:$0xff]
  %v1386 = vld [vmem:[%s3 + $0x700] sm:$0xff]
  %v1387 = vld [vmem:[%s3 + $0x708] sm:$0xff]
  %v1388 = vld [vmem:[%s3 + $0x710] sm:$0xff]
  %v1389 = vld [vmem:[%s3 + $0x718] sm:$0xff]
  %v1390 = vld [vmem:[%s3 + $0x720] sm:$0xff]
  %v1391 = vld [vmem:[%s3 + $0x728] sm:$0xff]
  %v1392 = vld [vmem:[%s3 + $0x730] sm:$0xff]
  %v1393 = vld [vmem:[%s3 + $0x738] sm:$0xff]
  %v1394 = vld [vmem:[%s3 + $0x740] sm:$0xff]
  %v1395 = vld [vmem:[%s3 + $0x748] sm:$0xff]
  %v1396 = vld [vmem:[%s3 + $0x750] sm:$0xff]
  %v1397 = vld [vmem:[%s3 + $0x758] sm:$0xff]
  %v1398 = vld [vmem:[%s3 + $0x760] sm:$0xff]
  %v1399 = vld [vmem:[%s3 + $0x768] sm:$0xff]
  %v1400 = vld [vmem:[%s3 + $0x770] sm:$0xff]
  %v1401 = vld [vmem:[%s3 + $0x778] sm:$0xff]
  %v1402 = vld [vmem:[%s3 + $0x780] sm:$0xff]
  %v1403 = vld [vmem:[%s3 + $0x788] sm:$0xff]
  %v1404 = vld [vmem:[%s3 + $0x790] sm:$0xff]
  %v1405 = vld [vmem:[%s3 + $0x798] sm:$0xff]
  %v1406 = vld [vmem:[%s3 + $0x7a0] sm:$0xff]
  %v1407 = vld [vmem:[%s3 + $0x7a8] sm:$0xff]
  %v1408 = vld [vmem:[%s3 + $0x7b0] sm:$0xff]
  %v1409 = vld [vmem:[%s3 + $0x7b8] sm:$0xff]
  %v1410 = vld [vmem:[%s3 + $0x7c0] sm:$0xff]
  %v1411 = vld [vmem:[%s3 + $0x7c8] sm:$0xff]
  %v1412 = vld [vmem:[%s3 + $0x7d0] sm:$0xff]
  %v1413 = vld [vmem:[%s3 + $0x7d8] sm:$0xff]
  %v1414 = vld [vmem:[%s3 + $0x7e0] sm:$0xff]
  %v1415 = vld [vmem:[%s3 + $0x7e8] sm:$0xff]
  %v1416 = vld [vmem:[%s3 + $0x7f0] sm:$0xff]
  %v1417 = vld [vmem:[%s3 + $0x7f8] sm:$0xff]
  %v1418 = vld [vmem:[%s3 + $0x800] sm:$0xff]
  %v1419 = vld [vmem:[%s3 + $0x808] sm:$0xff]
  %v1420 = vld [vmem:[%s3 + $0x810] sm:$0xff]
  %v1421 = vld [vmem:[%s3 + $0x818] sm:$0xff]
  %v1422 = vld [vmem:[%s3 + $0x820] sm:$0xff]
  %v1423 = vld [vmem:[%s3 + $0x828] sm:$0xff]
  %v1424 = vld [vmem:[%s3 + $0x830] sm:$0xff]
  %v1425 = vld [vmem:[%s3 + $0x838] sm:$0xff]
  %v1426 = vpack.c.bf16 %v1164, %v1162
  %v1427 = vpack.c.bf16 %v1165, %v1163
  %v1428 = vpack.c.bf16 %v1168, %v1166
  %v1429 = vpack.c.bf16 %v1169, %v1167
  %v1430 = vpack.c.bf16 %v1172, %v1170
  %v1431 = vpack.c.bf16 %v1173, %v1171
  %v1432 = vpack.c.bf16 %v1176, %v1174
  %v1433 = vpack.c.bf16 %v1177, %v1175
  %v1434 = vpack.c.bf16 %v1180, %v1178
  %v1435 = vpack.c.bf16 %v1181, %v1179
  %v1436 = vpack.c.bf16 %v1184, %v1182
  %v1437 = vpack.c.bf16 %v1185, %v1183
  %v1438 = vpack.c.bf16 %v1188, %v1186
  %v1439 = vpack.c.bf16 %v1189, %v1187
  %v1440 = vpack.c.bf16 %v1192, %v1190
  %v1441 = vpack.c.bf16 %v1193, %v1191
  %v1442 = vpack.c.bf16 %v1196, %v1194
  %v1443 = vpack.c.bf16 %v1197, %v1195
  %v1444 = vpack.c.bf16 %v1200, %v1198
  %v1445 = vpack.c.bf16 %v1201, %v1199
  %v1446 = vpack.c.bf16 %v1204, %v1202
  %v1447 = vpack.c.bf16 %v1205, %v1203
  %v1448 = vpack.c.bf16 %v1208, %v1206
  %v1449 = vpack.c.bf16 %v1209, %v1207
  %v1450 = vpack.c.bf16 %v1212, %v1210
  %v1451 = vpack.c.bf16 %v1213, %v1211
  %v1452 = vpack.c.bf16 %v1216, %v1214
  %v1453 = vpack.c.bf16 %v1217, %v1215
  %v1454 = vpack.c.bf16 %v1220, %v1218
  %v1455 = vpack.c.bf16 %v1221, %v1219
  %v1456 = vpack.c.bf16 %v1224, %v1222
  %v1457 = vpack.c.bf16 %v1225, %v1223
  %v1458 = vpack.c.bf16 %v1228, %v1226
  %v1459 = vpack.c.bf16 %v1229, %v1227
  %v1460 = vpack.c.bf16 %v1232, %v1230
  %v1461 = vpack.c.bf16 %v1233, %v1231
  %v1462 = vpack.c.bf16 %v1236, %v1234
  %v1463 = vpack.c.bf16 %v1237, %v1235
  %v1464 = vpack.c.bf16 %v1240, %v1238
  %v1465 = vpack.c.bf16 %v1241, %v1239
  %v1466 = vpack.c.bf16 %v1244, %v1242
  %v1467 = vpack.c.bf16 %v1245, %v1243
  %v1468 = vpack.c.bf16 %v1248, %v1246
  %v1469 = vpack.c.bf16 %v1249, %v1247
  %v1470 = vpack.c.bf16 %v1252, %v1250
  %v1471 = vpack.c.bf16 %v1253, %v1251
  %v1472 = vpack.c.bf16 %v1256, %v1254
  %v1473 = vpack.c.bf16 %v1257, %v1255
  %v1474 = vpack.c.bf16 %v1260, %v1258
  %v1475 = vpack.c.bf16 %v1261, %v1259
  %v1476 = vpack.c.bf16 %v1264, %v1262
  %v1477 = vpack.c.bf16 %v1265, %v1263
  %v1478 = vpack.c.bf16 %v1268, %v1266
  %v1479 = vpack.c.bf16 %v1269, %v1267
  %v1480 = vpack.c.bf16 %v1272, %v1270
  %v1481 = vpack.c.bf16 %v1273, %v1271
  %v1482 = vpack.c.bf16 %v1276, %v1274
  %v1483 = vpack.c.bf16 %v1277, %v1275
  %v1484 = vpack.c.bf16 %v1280, %v1278
  %v1485 = vpack.c.bf16 %v1281, %v1279
  %v1486 = vpack.c.bf16 %v1284, %v1282
  %v1487 = vpack.c.bf16 %v1285, %v1283
  %v1488 = vpack.c.bf16 %v1288, %v1286
  %v1489 = vpack.c.bf16 %v1289, %v1287
  %v1490 = vpack.c.bf16 %v1292, %v1290
  %v1491 = vpack.c.bf16 %v1293, %v1291
  %v1492 = vpack.c.bf16 %v1296, %v1294
  %v1493 = vpack.c.bf16 %v1297, %v1295
  %v1494 = vpack.c.bf16 %v1300, %v1298
  %v1495 = vpack.c.bf16 %v1301, %v1299
  %v1496 = vpack.c.bf16 %v1304, %v1302
  %v1497 = vpack.c.bf16 %v1305, %v1303
  %v1498 = vpack.c.bf16 %v1308, %v1306
  %v1499 = vpack.c.bf16 %v1309, %v1307
  %v1500 = vpack.c.bf16 %v1312, %v1310
  %v1501 = vpack.c.bf16 %v1313, %v1311
  %v1502 = vpack.c.bf16 %v1316, %v1314
  %v1503 = vpack.c.bf16 %v1317, %v1315
  %v1504 = vpack.c.bf16 %v1320, %v1318
  %v1505 = vpack.c.bf16 %v1321, %v1319
  %v1506 = vpack.c.bf16 %v1324, %v1322
  %v1507 = vpack.c.bf16 %v1325, %v1323
  %v1508 = vpack.c.bf16 %v1328, %v1326
  %v1509 = vpack.c.bf16 %v1329, %v1327
  %v1510 = vpack.c.bf16 %v1332, %v1330
  %v1511 = vpack.c.bf16 %v1333, %v1331
  %v1512 = vpack.c.bf16 %v1336, %v1334
  %v1513 = vpack.c.bf16 %v1337, %v1335
  %v1514 = vpack.c.bf16 %v1340, %v1338
  %v1515 = vpack.c.bf16 %v1341, %v1339
  %v1516 = vpack.c.bf16 %v1344, %v1342
  %v1517 = vpack.c.bf16 %v1345, %v1343
  %v1518 = vpack.c.bf16 %v1348, %v1346
  %v1519 = vpack.c.bf16 %v1349, %v1347
  %v1520 = vpack.c.bf16 %v1352, %v1350
  %v1521 = vpack.c.bf16 %v1353, %v1351
  %v1522 = vpack.c.bf16 %v1356, %v1354
  %v1523 = vpack.c.bf16 %v1357, %v1355
  %v1524 = vpack.c.bf16 %v1360, %v1358
  %v1525 = vpack.c.bf16 %v1361, %v1359
  %v1526 = vpack.c.bf16 %v1364, %v1362
  %v1527 = vpack.c.bf16 %v1365, %v1363
  %v1528 = vpack.c.bf16 %v1368, %v1366
  %v1529 = vpack.c.bf16 %v1369, %v1367
  %v1530 = vpack.c.bf16 %v1372, %v1370
  %v1531 = vpack.c.bf16 %v1373, %v1371
  %v1532 = vpack.c.bf16 %v1376, %v1374
  %v1533 = vpack.c.bf16 %v1377, %v1375
  %v1534 = vpack.c.bf16 %v1380, %v1378
  %v1535 = vpack.c.bf16 %v1381, %v1379
  %v1536 = vpack.c.bf16 %v1384, %v1382
  %v1537 = vpack.c.bf16 %v1385, %v1383
  %v1538 = vpack.c.bf16 %v1388, %v1386
  %v1539 = vpack.c.bf16 %v1389, %v1387
  %v1540 = vpack.c.bf16 %v1392, %v1390
  %v1541 = vpack.c.bf16 %v1393, %v1391
  %v1542 = vpack.c.bf16 %v1396, %v1394
  %v1543 = vpack.c.bf16 %v1397, %v1395
  %v1544 = vpack.c.bf16 %v1400, %v1398
  %v1545 = vpack.c.bf16 %v1401, %v1399
  %v1546 = vpack.c.bf16 %v1404, %v1402
  %v1547 = vpack.c.bf16 %v1405, %v1403
  %v1548 = vpack.c.bf16 %v1408, %v1406
  %v1549 = vpack.c.bf16 %v1409, %v1407
  %v1550 = vpack.c.bf16 %v1412, %v1410
  %v1551 = vpack.c.bf16 %v1413, %v1411
  %v1552 = vpack.c.bf16 %v1416, %v1414
  %v1553 = vpack.c.bf16 %v1417, %v1415
  %v1554 = vpack.c.bf16 %v1420, %v1418
  %v1555 = vpack.c.bf16 %v1421, %v1419
  %v1556 = vpack.c.bf16 %v1424, %v1422
  %v1557 = vpack.c.bf16 %v1425, %v1423
  %vm1558 = vcmask 261120
  %v1560 = vsel %vm1558, %v1071, 0
  %v1563 = vsel %vm1558, %v1080, 0
  %v1566 = vsel %vm1558, %v1089, 0
  %v1569 = vsel %vm1558, %v1098, 0
  %v1572 = vsel %vm1558, %v1107, 0
  %v1575 = vsel %vm1558, %v1116, 0
  %v1578 = vsel %vm1558, %v1125, 0
  %v1581 = vsel %vm1558, %v1134, 0
  %v1584 = vsel %vm1558, %v1143, 0
  %v1587 = vsel %vm1558, %v1152, 0
  %v1590 = vsel %vm1558, %v1161, 0
  %1592 = vmatprep.subr.bf16.mxu0 %v1441
  %1593 = vmatpush1.bf16.msra.mxu0 %v1440
  %1594 = vmatprep.subr.bf16.mxu0 %v1439
  %1595 = vmatpush1.bf16.msra.mxu0 %v1438
  %1596 = vmatprep.subr.bf16.mxu0 %v1437
  %1597 = vmatpush1.bf16.msra.mxu0 %v1436
  %1598 = vmatprep.subr.bf16.mxu0 %v1435
  %1599 = vmatpush1.bf16.msra.mxu0 %v1434
  %1600 = vmatprep.subr.bf16.mxu0 %v1433
  %1601 = vmatpush1.bf16.msra.mxu0 %v1432
  %1602 = vmatprep.subr.bf16.mxu0 %v1431
  %1603 = vmatpush1.bf16.msra.mxu0 %v1430
  %1604 = vmatprep.subr.bf16.mxu0 %v1429
  %1605 = vmatpush1.bf16.msra.mxu0 %v1428
  %1606 = vmatprep.subr.bf16.mxu0 %v1427
  %1607 = vmatpush1.bf16.msra.mxu0 %v1426
  %1608 = vmatprep.subr.bf16.mxu0 %v1457
  %1609 = vmatpush2.bf16.msra.mxu0 %v1456
  %1610 = vmatprep.subr.bf16.mxu0 %v1455
  %1611 = vmatpush2.bf16.msra.mxu0 %v1454
  %1612 = vmatprep.subr.bf16.mxu0 %v1453
  %1613 = vmatpush2.bf16.msra.mxu0 %v1452
  %1614 = vmatprep.subr.bf16.mxu0 %v1451
  %1615 = vmatpush2.bf16.msra.mxu0 %v1450
  %1616 = vmatprep.subr.bf16.mxu0 %v1449
  %1617 = vmatpush2.bf16.msra.mxu0 %v1448
  %1618 = vmatprep.subr.bf16.mxu0 %v1447
  %1619 = vmatpush2.bf16.msra.mxu0 %v1446
  %1620 = vmatprep.subr.bf16.mxu0 %v1445
  %1621 = vmatpush2.bf16.msra.mxu0 %v1444
  %1622 = vmatprep.subr.bf16.mxu0 %v1443
  %1623 = vmatpush2.bf16.msra.mxu0 %v1442
  %1624 = vmatprep.mubr.bf16.mxu0 %v1064
  %1625 = vmatmul.mubr.bf16.gmra.mxu0 %v1063
  %v1626 = vpop.f32.mrf.mxu0
  %v1627 = vadd.f32 0.0, %v1626
  %v1628 = vpop.f32.mrf.mxu0
  %v1629 = vadd.f32 0.0, %v1628
  %v1630 = vpop.f32.mrf.mxu0
  %v1631 = vadd.f32 0.0, %v1630
  %v1632 = vpop.f32.mrf.mxu0
  %v1633 = vadd.f32 0.0, %v1632
  %1634 = vmatprep.mubr.bf16.mxu0 %v1073
  %1635 = vmatmul.mubr.bf16.gmra.mxu0 %v1072
  %v1636 = vpop.f32.mrf.mxu0
  %v1637 = vadd.f32 0.0, %v1636
  %v1638 = vpop.f32.mrf.mxu0
  %v1639 = vadd.f32 0.0, %v1638
  %v1640 = vpop.f32.mrf.mxu0
  %v1641 = vadd.f32 0.0, %v1640
  %v1642 = vpop.f32.mrf.mxu0
  %v1643 = vadd.f32 0.0, %v1642
  %1644 = vmatprep.mubr.bf16.mxu0 %v1082
  %1645 = vmatmul.mubr.bf16.gmra.mxu0 %v1081
  %v1646 = vpop.f32.mrf.mxu0
  %v1647 = vadd.f32 0.0, %v1646
  %v1648 = vpop.f32.mrf.mxu0
  %v1649 = vadd.f32 0.0, %v1648
  %v1650 = vpop.f32.mrf.mxu0
  %v1651 = vadd.f32 0.0, %v1650
  %v1652 = vpop.f32.mrf.mxu0
  %v1653 = vadd.f32 0.0, %v1652
  %1654 = vmatprep.mubr.bf16.mxu0 %v1091
  %1655 = vmatmul.mubr.bf16.gmra.mxu0 %v1090
  %v1656 = vpop.f32.mrf.mxu0
  %v1657 = vadd.f32 0.0, %v1656
  %v1658 = vpop.f32.mrf.mxu0
  %v1659 = vadd.f32 0.0, %v1658
  %v1660 = vpop.f32.mrf.mxu0
  %v1661 = vadd.f32 0.0, %v1660
  %v1662 = vpop.f32.mrf.mxu0
  %v1663 = vadd.f32 0.0, %v1662
  %1664 = vmatprep.mubr.bf16.mxu0 %v1100
  %1665 = vmatmul.mubr.bf16.gmra.mxu0 %v1099
  %v1666 = vpop.f32.mrf.mxu0
  %v1667 = vadd.f32 0.0, %v1666
  %v1668 = vpop.f32.mrf.mxu0
  %v1669 = vadd.f32 0.0, %v1668
  %v1670 = vpop.f32.mrf.mxu0
  %v1671 = vadd.f32 0.0, %v1670
  %v1672 = vpop.f32.mrf.mxu0
  %v1673 = vadd.f32 0.0, %v1672
  %1674 = vmatprep.mubr.bf16.mxu0 %v1109
  %1675 = vmatmul.mubr.bf16.gmra.mxu0 %v1108
  %v1676 = vpop.f32.mrf.mxu0
  %v1677 = vadd.f32 0.0, %v1676
  %v1678 = vpop.f32.mrf.mxu0
  %v1679 = vadd.f32 0.0, %v1678
  %v1680 = vpop.f32.mrf.mxu0
  %v1681 = vadd.f32 0.0, %v1680
  %v1682 = vpop.f32.mrf.mxu0
  %v1683 = vadd.f32 0.0, %v1682
  %1684 = vmatprep.mubr.bf16.mxu0 %v1118
  %1685 = vmatmul.mubr.bf16.gmra.mxu0 %v1117
  %v1686 = vpop.f32.mrf.mxu0
  %v1687 = vadd.f32 0.0, %v1686
  %v1688 = vpop.f32.mrf.mxu0
  %v1689 = vadd.f32 0.0, %v1688
  %v1690 = vpop.f32.mrf.mxu0
  %v1691 = vadd.f32 0.0, %v1690
  %v1692 = vpop.f32.mrf.mxu0
  %v1693 = vadd.f32 0.0, %v1692
  %1694 = vmatprep.mubr.bf16.mxu0 %v1127
  %1695 = vmatmul.mubr.bf16.gmra.mxu0 %v1126
  %v1696 = vpop.f32.mrf.mxu0
  %v1697 = vadd.f32 0.0, %v1696
  %v1698 = vpop.f32.mrf.mxu0
  %v1699 = vadd.f32 0.0, %v1698
  %v1700 = vpop.f32.mrf.mxu0
  %v1701 = vadd.f32 0.0, %v1700
  %v1702 = vpop.f32.mrf.mxu0
  %v1703 = vadd.f32 0.0, %v1702
  %1704 = vmatprep.mubr.bf16.mxu0 %v1136
  %1705 = vmatmul.mubr.bf16.gmra.mxu0 %v1135
  %v1706 = vpop.f32.mrf.mxu0
  %v1707 = vadd.f32 0.0, %v1706
  %v1708 = vpop.f32.mrf.mxu0
  %v1709 = vadd.f32 0.0, %v1708
  %v1710 = vpop.f32.mrf.mxu0
  %v1711 = vadd.f32 0.0, %v1710
  %v1712 = vpop.f32.mrf.mxu0
  %v1713 = vadd.f32 0.0, %v1712
  %1714 = vmatprep.mubr.bf16.mxu0 %v1145
  %1715 = vmatmul.mubr.bf16.gmra.mxu0 %v1144
  %v1716 = vpop.f32.mrf.mxu0
  %v1717 = vadd.f32 0.0, %v1716
  %v1718 = vpop.f32.mrf.mxu0
  %v1719 = vadd.f32 0.0, %v1718
  %v1720 = vpop.f32.mrf.mxu0
  %v1721 = vadd.f32 0.0, %v1720
  %v1722 = vpop.f32.mrf.mxu0
  %v1723 = vadd.f32 0.0, %v1722
  %1724 = vmatprep.mubr.bf16.mxu0 %v1154
  %1725 = vmatmul.mubr.bf16.gmra.mxu0 %v1153
  %v1726 = vpop.f32.mrf.mxu0
  %v1727 = vadd.f32 0.0, %v1726
  %v1728 = vpop.f32.mrf.mxu0
  %v1729 = vadd.f32 0.0, %v1728
  %v1730 = vpop.f32.mrf.mxu0
  %v1731 = vadd.f32 0.0, %v1730
  %v1732 = vpop.f32.mrf.mxu0
  %v1733 = vadd.f32 0.0, %v1732
  %1734 = vdwg.mxu0
  %1735 = vmatprep.subr.bf16.mxu0 %v1473
  %1736 = vmatpush1.bf16.msra.mxu0 %v1472
  %1737 = vmatprep.subr.bf16.mxu0 %v1471
  %1738 = vmatpush1.bf16.msra.mxu0 %v1470
  %1739 = vmatprep.subr.bf16.mxu0 %v1469
  %1740 = vmatpush1.bf16.msra.mxu0 %v1468
  %1741 = vmatprep.subr.bf16.mxu0 %v1467
  %1742 = vmatpush1.bf16.msra.mxu0 %v1466
  %1743 = vmatprep.subr.bf16.mxu0 %v1465
  %1744 = vmatpush1.bf16.msra.mxu0 %v1464
  %1745 = vmatprep.subr.bf16.mxu0 %v1463
  %1746 = vmatpush1.bf16.msra.mxu0 %v1462
  %1747 = vmatprep.subr.bf16.mxu0 %v1461
  %1748 = vmatpush1.bf16.msra.mxu0 %v1460
  %1749 = vmatprep.subr.bf16.mxu0 %v1459
  %1750 = vmatpush1.bf16.msra.mxu0 %v1458
  %1751 = vmatprep.subr.bf16.mxu0 %v1489
  %1752 = vmatpush2.bf16.msra.mxu0 %v1488
  %1753 = vmatprep.subr.bf16.mxu0 %v1487
  %1754 = vmatpush2.bf16.msra.mxu0 %v1486
  %1755 = vmatprep.subr.bf16.mxu0 %v1485
  %1756 = vmatpush2.bf16.msra.mxu0 %v1484
  %1757 = vmatprep.subr.bf16.mxu0 %v1483
  %1758 = vmatpush2.bf16.msra.mxu0 %v1482
  %1759 = vmatprep.subr.bf16.mxu0 %v1481
  %1760 = vmatpush2.bf16.msra.mxu0 %v1480
  %1761 = vmatprep.subr.bf16.mxu0 %v1479
  %1762 = vmatpush2.bf16.msra.mxu0 %v1478
  %1763 = vmatprep.subr.bf16.mxu0 %v1477
  %1764 = vmatpush2.bf16.msra.mxu0 %v1476
  %1765 = vmatprep.subr.bf16.mxu0 %v1475
  %1766 = vmatpush2.bf16.msra.mxu0 %v1474
  %1767 = vmatprep.mubr.bf16.mxu0 %v1066
  %1768 = vmatmul.mubr.bf16.gmra.mxu0 %v1065
  %v1769 = vpop.f32.mrf.mxu0
  %v1770 = vadd.f32 %v1627, %v1769
  %v1771 = vpop.f32.mrf.mxu0
  %v1772 = vadd.f32 %v1629, %v1771
  %v1773 = vpop.f32.mrf.mxu0
  %v1774 = vadd.f32 %v1631, %v1773
  %v1775 = vpop.f32.mrf.mxu0
  %v1776 = vadd.f32 %v1633, %v1775
  %1777 = vmatprep.mubr.bf16.mxu0 %v1075
  %1778 = vmatmul.mubr.bf16.gmra.mxu0 %v1074
  %v1779 = vpop.f32.mrf.mxu0
  %v1780 = vadd.f32 %v1637, %v1779
  %v1781 = vpop.f32.mrf.mxu0
  %v1782 = vadd.f32 %v1639, %v1781
  %v1783 = vpop.f32.mrf.mxu0
  %v1784 = vadd.f32 %v1641, %v1783
  %v1785 = vpop.f32.mrf.mxu0
  %v1786 = vadd.f32 %v1643, %v1785
  %1787 = vmatprep.mubr.bf16.mxu0 %v1084
  %1788 = vmatmul.mubr.bf16.gmra.mxu0 %v1083
  %v1789 = vpop.f32.mrf.mxu0
  %v1790 = vadd.f32 %v1647, %v1789
  %v1791 = vpop.f32.mrf.mxu0
  %v1792 = vadd.f32 %v1649, %v1791
  %v1793 = vpop.f32.mrf.mxu0
  %v1794 = vadd.f32 %v1651, %v1793
  %v1795 = vpop.f32.mrf.mxu0
  %v1796 = vadd.f32 %v1653, %v1795
  %1797 = vmatprep.mubr.bf16.mxu0 %v1093
  %1798 = vmatmul.mubr.bf16.gmra.mxu0 %v1092
  %v1799 = vpop.f32.mrf.mxu0
  %v1800 = vadd.f32 %v1657, %v1799
  %v1801 = vpop.f32.mrf.mxu0
  %v1802 = vadd.f32 %v1659, %v1801
  %v1803 = vpop.f32.mrf.mxu0
  %v1804 = vadd.f32 %v1661, %v1803
  %v1805 = vpop.f32.mrf.mxu0
  %v1806 = vadd.f32 %v1663, %v1805
  %1807 = vmatprep.mubr.bf16.mxu0 %v1102
  %1808 = vmatmul.mubr.bf16.gmra.mxu0 %v1101
  %v1809 = vpop.f32.mrf.mxu0
  %v1810 = vadd.f32 %v1667, %v1809
  %v1811 = vpop.f32.mrf.mxu0
  %v1812 = vadd.f32 %v1669, %v1811
  %v1813 = vpop.f32.mrf.mxu0
  %v1814 = vadd.f32 %v1671, %v1813
  %v1815 = vpop.f32.mrf.mxu0
  %v1816 = vadd.f32 %v1673, %v1815
  %1817 = vmatprep.mubr.bf16.mxu0 %v1111
  %1818 = vmatmul.mubr.bf16.gmra.mxu0 %v1110
  %v1819 = vpop.f32.mrf.mxu0
  %v1820 = vadd.f32 %v1677, %v1819
  %v1821 = vpop.f32.mrf.mxu0
  %v1822 = vadd.f32 %v1679, %v1821
  %v1823 = vpop.f32.mrf.mxu0
  %v1824 = vadd.f32 %v1681, %v1823
  %v1825 = vpop.f32.mrf.mxu0
  %v1826 = vadd.f32 %v1683, %v1825
  %1827 = vmatprep.mubr.bf16.mxu0 %v1120
  %1828 = vmatmul.mubr.bf16.gmra.mxu0 %v1119
  %v1829 = vpop.f32.mrf.mxu0
  %v1830 = vadd.f32 %v1687, %v1829
  %v1831 = vpop.f32.mrf.mxu0
  %v1832 = vadd.f32 %v1689, %v1831
  %v1833 = vpop.f32.mrf.mxu0
  %v1834 = vadd.f32 %v1691, %v1833
  %v1835 = vpop.f32.mrf.mxu0
  %v1836 = vadd.f32 %v1693, %v1835
  %1837 = vmatprep.mubr.bf16.mxu0 %v1129
  %1838 = vmatmul.mubr.bf16.gmra.mxu0 %v1128
  %v1839 = vpop.f32.mrf.mxu0
  %v1840 = vadd.f32 %v1697, %v1839
  %v1841 = vpop.f32.mrf.mxu0
  %v1842 = vadd.f32 %v1699, %v1841
  %v1843 = vpop.f32.mrf.mxu0
  %v1844 = vadd.f32 %v1701, %v1843
  %v1845 = vpop.f32.mrf.mxu0
  %v1846 = vadd.f32 %v1703, %v1845
  %1847 = vmatprep.mubr.bf16.mxu0 %v1138
  %1848 = vmatmul.mubr.bf16.gmra.mxu0 %v1137
  %v1849 = vpop.f32.mrf.mxu0
  %v1850 = vadd.f32 %v1707, %v1849
  %v1851 = vpop.f32.mrf.mxu0
  %v1852 = vadd.f32 %v1709, %v1851
  %v1853 = vpop.f32.mrf.mxu0
  %v1854 = vadd.f32 %v1711, %v1853
  %v1855 = vpop.f32.mrf.mxu0
  %v1856 = vadd.f32 %v1713, %v1855
  %1857 = vmatprep.mubr.bf16.mxu0 %v1147
  %1858 = vmatmul.mubr.bf16.gmra.mxu0 %v1146
  %v1859 = vpop.f32.mrf.mxu0
  %v1860 = vadd.f32 %v1717, %v1859
  %v1861 = vpop.f32.mrf.mxu0
  %v1862 = vadd.f32 %v1719, %v1861
  %v1863 = vpop.f32.mrf.mxu0
  %v1864 = vadd.f32 %v1721, %v1863
  %v1865 = vpop.f32.mrf.mxu0
  %v1866 = vadd.f32 %v1723, %v1865
  %1867 = vmatprep.mubr.bf16.mxu0 %v1156
  %1868 = vmatmul.mubr.bf16.gmra.mxu0 %v1155
  %v1869 = vpop.f32.mrf.mxu0
  %v1870 = vadd.f32 %v1727, %v1869
  %v1871 = vpop.f32.mrf.mxu0
  %v1872 = vadd.f32 %v1729, %v1871
  %v1873 = vpop.f32.mrf.mxu0
  %v1874 = vadd.f32 %v1731, %v1873
  %v1875 = vpop.f32.mrf.mxu0
  %v1876 = vadd.f32 %v1733, %v1875
  %1877 = vdwg.mxu0
  %1878 = vmatprep.subr.bf16.mxu0 %v1505
  %1879 = vmatpush1.bf16.msra.mxu0 %v1504
  %1880 = vmatprep.subr.bf16.mxu0 %v1503
  %1881 = vmatpush1.bf16.msra.mxu0 %v1502
  %1882 = vmatprep.subr.bf16.mxu0 %v1501
  %1883 = vmatpush1.bf16.msra.mxu0 %v1500
  %1884 = vmatprep.subr.bf16.mxu0 %v1499
  %1885 = vmatpush1.bf16.msra.mxu0 %v1498
  %1886 = vmatprep.subr.bf16.mxu0 %v1497
  %1887 = vmatpush1.bf16.msra.mxu0 %v1496
  %1888 = vmatprep.subr.bf16.mxu0 %v1495
  %1889 = vmatpush1.bf16.msra.mxu0 %v1494
  %1890 = vmatprep.subr.bf16.mxu0 %v1493
  %1891 = vmatpush1.bf16.msra.mxu0 %v1492
  %1892 = vmatprep.subr.bf16.mxu0 %v1491
  %1893 = vmatpush1.bf16.msra.mxu0 %v1490
  %1894 = vmatprep.subr.bf16.mxu0 %v1521
  %1895 = vmatpush2.bf16.msra.mxu0 %v1520
  %1896 = vmatprep.subr.bf16.mxu0 %v1519
  %1897 = vmatpush2.bf16.msra.mxu0 %v1518
  %1898 = vmatprep.subr.bf16.mxu0 %v1517
  %1899 = vmatpush2.bf16.msra.mxu0 %v1516
  %1900 = vmatprep.subr.bf16.mxu0 %v1515
  %1901 = vmatpush2.bf16.msra.mxu0 %v1514
  %1902 = vmatprep.subr.bf16.mxu0 %v1513
  %1903 = vmatpush2.bf16.msra.mxu0 %v1512
  %1904 = vmatprep.subr.bf16.mxu0 %v1511
  %1905 = vmatpush2.bf16.msra.mxu0 %v1510
  %1906 = vmatprep.subr.bf16.mxu0 %v1509
  %1907 = vmatpush2.bf16.msra.mxu0 %v1508
  %1908 = vmatprep.subr.bf16.mxu0 %v1507
  %1909 = vmatpush2.bf16.msra.mxu0 %v1506
  %1910 = vmatprep.mubr.bf16.mxu0 %v1068
  %1911 = vmatmul.mubr.bf16.gmra.mxu0 %v1067
  %v1912 = vpop.f32.mrf.mxu0
  %v1913 = vadd.f32 %v1770, %v1912
  %v1914 = vpop.f32.mrf.mxu0
  %v1915 = vadd.f32 %v1772, %v1914
  %v1916 = vpop.f32.mrf.mxu0
  %v1917 = vadd.f32 %v1774, %v1916
  %v1918 = vpop.f32.mrf.mxu0
  %v1919 = vadd.f32 %v1776, %v1918
  %1920 = vmatprep.mubr.bf16.mxu0 %v1077
  %1921 = vmatmul.mubr.bf16.gmra.mxu0 %v1076
  %v1922 = vpop.f32.mrf.mxu0
  %v1923 = vadd.f32 %v1780, %v1922
  %v1924 = vpop.f32.mrf.mxu0
  %v1925 = vadd.f32 %v1782, %v1924
  %v1926 = vpop.f32.mrf.mxu0
  %v1927 = vadd.f32 %v1784, %v1926
  %v1928 = vpop.f32.mrf.mxu0
  %v1929 = vadd.f32 %v1786, %v1928
  %1930 = vmatprep.mubr.bf16.mxu0 %v1086
  %1931 = vmatmul.mubr.bf16.gmra.mxu0 %v1085
  %v1932 = vpop.f32.mrf.mxu0
  %v1933 = vadd.f32 %v1790, %v1932
  %v1934 = vpop.f32.mrf.mxu0
  %v1935 = vadd.f32 %v1792, %v1934
  %v1936 = vpop.f32.mrf.mxu0
  %v1937 = vadd.f32 %v1794, %v1936
  %v1938 = vpop.f32.mrf.mxu0
  %v1939 = vadd.f32 %v1796, %v1938
  %1940 = vmatprep.mubr.bf16.mxu0 %v1095
  %1941 = vmatmul.mubr.bf16.gmra.mxu0 %v1094
  %v1942 = vpop.f32.mrf.mxu0
  %v1943 = vadd.f32 %v1800, %v1942
  %v1944 = vpop.f32.mrf.mxu0
  %v1945 = vadd.f32 %v1802, %v1944
  %v1946 = vpop.f32.mrf.mxu0
  %v1947 = vadd.f32 %v1804, %v1946
  %v1948 = vpop.f32.mrf.mxu0
  %v1949 = vadd.f32 %v1806, %v1948
  %1950 = vmatprep.mubr.bf16.mxu0 %v1104
  %1951 = vmatmul.mubr.bf16.gmra.mxu0 %v1103
  %v1952 = vpop.f32.mrf.mxu0
  %v1953 = vadd.f32 %v1810, %v1952
  %v1954 = vpop.f32.mrf.mxu0
  %v1955 = vadd.f32 %v1812, %v1954
  %v1956 = vpop.f32.mrf.mxu0
  %v1957 = vadd.f32 %v1814, %v1956
  %v1958 = vpop.f32.mrf.mxu0
  %v1959 = vadd.f32 %v1816, %v1958
  %1960 = vmatprep.mubr.bf16.mxu0 %v1113
  %1961 = vmatmul.mubr.bf16.gmra.mxu0 %v1112
  %v1962 = vpop.f32.mrf.mxu0
  %v1963 = vadd.f32 %v1820, %v1962
  %v1964 = vpop.f32.mrf.mxu0
  %v1965 = vadd.f32 %v1822, %v1964
  %v1966 = vpop.f32.mrf.mxu0
  %v1967 = vadd.f32 %v1824, %v1966
  %v1968 = vpop.f32.mrf.mxu0
  %v1969 = vadd.f32 %v1826, %v1968
  %1970 = vmatprep.mubr.bf16.mxu0 %v1122
  %1971 = vmatmul.mubr.bf16.gmra.mxu0 %v1121
  %v1972 = vpop.f32.mrf.mxu0
  %v1973 = vadd.f32 %v1830, %v1972
  %v1974 = vpop.f32.mrf.mxu0
  %v1975 = vadd.f32 %v1832, %v1974
  %v1976 = vpop.f32.mrf.mxu0
  %v1977 = vadd.f32 %v1834, %v1976
  %v1978 = vpop.f32.mrf.mxu0
  %v1979 = vadd.f32 %v1836, %v1978
  %1980 = vmatprep.mubr.bf16.mxu0 %v1131
  %1981 = vmatmul.mubr.bf16.gmra.mxu0 %v1130
  %v1982 = vpop.f32.mrf.mxu0
  %v1983 = vadd.f32 %v1840, %v1982
  %v1984 = vpop.f32.mrf.mxu0
  %v1985 = vadd.f32 %v1842, %v1984
  %v1986 = vpop.f32.mrf.mxu0
  %v1987 = vadd.f32 %v1844, %v1986
  %v1988 = vpop.f32.mrf.mxu0
  %v1989 = vadd.f32 %v1846, %v1988
  %1990 = vmatprep.mubr.bf16.mxu0 %v1140
  %1991 = vmatmul.mubr.bf16.gmra.mxu0 %v1139
  %v1992 = vpop.f32.mrf.mxu0
  %v1993 = vadd.f32 %v1850, %v1992
  %v1994 = vpop.f32.mrf.mxu0
  %v1995 = vadd.f32 %v1852, %v1994
  %v1996 = vpop.f32.mrf.mxu0
  %v1997 = vadd.f32 %v1854, %v1996
  %v1998 = vpop.f32.mrf.mxu0
  %v1999 = vadd.f32 %v1856, %v1998
  %2000 = vmatprep.mubr.bf16.mxu0 %v1149
  %2001 = vmatmul.mubr.bf16.gmra.mxu0 %v1148
  %v2002 = vpop.f32.mrf.mxu0
  %v2003 = vadd.f32 %v1860, %v2002
  %v2004 = vpop.f32.mrf.mxu0
  %v2005 = vadd.f32 %v1862, %v2004
  %v2006 = vpop.f32.mrf.mxu0
  %v2007 = vadd.f32 %v1864, %v2006
  %v2008 = vpop.f32.mrf.mxu0
  %v2009 = vadd.f32 %v1866, %v2008
  %2010 = vmatprep.mubr.bf16.mxu0 %v1158
  %2011 = vmatmul.mubr.bf16.gmra.mxu0 %v1157
  %v2012 = vpop.f32.mrf.mxu0
  %v2013 = vadd.f32 %v1870, %v2012
  %v2014 = vpop.f32.mrf.mxu0
  %v2015 = vadd.f32 %v1872, %v2014
  %v2016 = vpop.f32.mrf.mxu0
  %v2017 = vadd.f32 %v1874, %v2016
  %v2018 = vpop.f32.mrf.mxu0
  %v2019 = vadd.f32 %v1876, %v2018
  %2020 = vdwg.mxu0
  %2021 = vmatprep.subr.bf16.mxu0 %v1537
  %2022 = vmatpush1.bf16.msra.mxu0 %v1536
  %2023 = vmatprep.subr.bf16.mxu0 %v1535
  %2024 = vmatpush1.bf16.msra.mxu0 %v1534
  %2025 = vmatprep.subr.bf16.mxu0 %v1533
  %2026 = vmatpush1.bf16.msra.mxu0 %v1532
  %2027 = vmatprep.subr.bf16.mxu0 %v1531
  %2028 = vmatpush1.bf16.msra.mxu0 %v1530
  %2029 = vmatprep.subr.bf16.mxu0 %v1529
  %2030 = vmatpush1.bf16.msra.mxu0 %v1528
  %2031 = vmatprep.subr.bf16.mxu0 %v1527
  %2032 = vmatpush1.bf16.msra.mxu0 %v1526
  %2033 = vmatprep.subr.bf16.mxu0 %v1525
  %2034 = vmatpush1.bf16.msra.mxu0 %v1524
  %2035 = vmatprep.subr.bf16.mxu0 %v1523
  %2036 = vmatpush1.bf16.msra.mxu0 %v1522
  %2037 = vmatprep.subr.bf16.mxu0 %v1553
  %2038 = vmatpush2.bf16.msra.mxu0 %v1552
  %2039 = vmatprep.subr.bf16.mxu0 %v1551
  %2040 = vmatpush2.bf16.msra.mxu0 %v1550
  %2041 = vmatprep.subr.bf16.mxu0 %v1549
  %2042 = vmatpush2.bf16.msra.mxu0 %v1548
  %2043 = vmatprep.subr.bf16.mxu0 %v1547
  %2044 = vmatpush2.bf16.msra.mxu0 %v1546
  %2045 = vmatprep.subr.bf16.mxu0 %v1545
  %2046 = vmatpush2.bf16.msra.mxu0 %v1544
  %2047 = vmatprep.subr.bf16.mxu0 %v1543
  %2048 = vmatpush2.bf16.msra.mxu0 %v1542
  %2049 = vmatprep.subr.bf16.mxu0 %v1541
  %2050 = vmatpush2.bf16.msra.mxu0 %v1540
  %2051 = vmatprep.subr.bf16.mxu0 %v1539
  %2052 = vmatpush2.bf16.msra.mxu0 %v1538
  %2053 = vmatprep.mubr.bf16.mxu0 %v1070
  %2054 = vmatmul.mubr.bf16.gmra.mxu0 %v1069
  %v2055 = vpop.f32.mrf.mxu0
  %v2056 = vadd.f32 %v1913, %v2055
  %v2057 = vpop.f32.mrf.mxu0
  %v2058 = vadd.f32 %v1915, %v2057
  %v2059 = vpop.f32.mrf.mxu0
  %v2060 = vadd.f32 %v1917, %v2059
  %v2061 = vpop.f32.mrf.mxu0
  %v2062 = vadd.f32 %v1919, %v2061
  %2063 = vmatprep.mubr.bf16.mxu0 %v1079
  %2064 = vmatmul.mubr.bf16.gmra.mxu0 %v1078
  %v2065 = vpop.f32.mrf.mxu0
  %v2066 = vadd.f32 %v1923, %v2065
  %v2067 = vpop.f32.mrf.mxu0
  %v2068 = vadd.f32 %v1925, %v2067
  %v2069 = vpop.f32.mrf.mxu0
  %v2070 = vadd.f32 %v1927, %v2069
  %v2071 = vpop.f32.mrf.mxu0
  %v2072 = vadd.f32 %v1929, %v2071
  %2073 = vmatprep.mubr.bf16.mxu0 %v1088
  %2074 = vmatmul.mubr.bf16.gmra.mxu0 %v1087
  %v2075 = vpop.f32.mrf.mxu0
  %v2076 = vadd.f32 %v1933, %v2075
  %v2077 = vpop.f32.mrf.mxu0
  %v2078 = vadd.f32 %v1935, %v2077
  %v2079 = vpop.f32.mrf.mxu0
  %v2080 = vadd.f32 %v1937, %v2079
  %v2081 = vpop.f32.mrf.mxu0
  %v2082 = vadd.f32 %v1939, %v2081
  %2083 = vmatprep.mubr.bf16.mxu0 %v1097
  %2084 = vmatmul.mubr.bf16.gmra.mxu0 %v1096
  %v2085 = vpop.f32.mrf.mxu0
  %v2086 = vadd.f32 %v1943, %v2085
  %v2087 = vpop.f32.mrf.mxu0
  %v2088 = vadd.f32 %v1945, %v2087
  %v2089 = vpop.f32.mrf.mxu0
  %v2090 = vadd.f32 %v1947, %v2089
  %v2091 = vpop.f32.mrf.mxu0
  %v2092 = vadd.f32 %v1949, %v2091
  %2093 = vmatprep.mubr.bf16.mxu0 %v1106
  %2094 = vmatmul.mubr.bf16.gmra.mxu0 %v1105
  %v2095 = vpop.f32.mrf.mxu0
  %v2096 = vadd.f32 %v1953, %v2095
  %v2097 = vpop.f32.mrf.mxu0
  %v2098 = vadd.f32 %v1955, %v2097
  %v2099 = vpop.f32.mrf.mxu0
  %v2100 = vadd.f32 %v1957, %v2099
  %v2101 = vpop.f32.mrf.mxu0
  %v2102 = vadd.f32 %v1959, %v2101
  %2103 = vmatprep.mubr.bf16.mxu0 %v1115
  %2104 = vmatmul.mubr.bf16.gmra.mxu0 %v1114
  %v2105 = vpop.f32.mrf.mxu0
  %v2106 = vadd.f32 %v1963, %v2105
  %v2107 = vpop.f32.mrf.mxu0
  %v2108 = vadd.f32 %v1965, %v2107
  %v2109 = vpop.f32.mrf.mxu0
  %v2110 = vadd.f32 %v1967, %v2109
  %v2111 = vpop.f32.mrf.mxu0
  %v2112 = vadd.f32 %v1969, %v2111
  %2113 = vmatprep.mubr.bf16.mxu0 %v1124
  %2114 = vmatmul.mubr.bf16.gmra.mxu0 %v1123
  %v2115 = vpop.f32.mrf.mxu0
  %v2116 = vadd.f32 %v1973, %v2115
  %v2117 = vpop.f32.mrf.mxu0
  %v2118 = vadd.f32 %v1975, %v2117
  %v2119 = vpop.f32.mrf.mxu0
  %v2120 = vadd.f32 %v1977, %v2119
  %v2121 = vpop.f32.mrf.mxu0
  %v2122 = vadd.f32 %v1979, %v2121
  %2123 = vmatprep.mubr.bf16.mxu0 %v1133
  %2124 = vmatmul.mubr.bf16.gmra.mxu0 %v1132
  %v2125 = vpop.f32.mrf.mxu0
  %v2126 = vadd.f32 %v1983, %v2125
  %v2127 = vpop.f32.mrf.mxu0
  %v2128 = vadd.f32 %v1985, %v2127
  %v2129 = vpop.f32.mrf.mxu0
  %v2130 = vadd.f32 %v1987, %v2129
  %v2131 = vpop.f32.mrf.mxu0
  %v2132 = vadd.f32 %v1989, %v2131
  %2133 = vmatprep.mubr.bf16.mxu0 %v1142
  %2134 = vmatmul.mubr.bf16.gmra.mxu0 %v1141
  %v2135 = vpop.f32.mrf.mxu0
  %v2136 = vadd.f32 %v1993, %v2135
  %v2137 = vpop.f32.mrf.mxu0
  %v2138 = vadd.f32 %v1995, %v2137
  %v2139 = vpop.f32.mrf.mxu0
  %v2140 = vadd.f32 %v1997, %v2139
  %v2141 = vpop.f32.mrf.mxu0
  %v2142 = vadd.f32 %v1999, %v2141
  %2143 = vmatprep.mubr.bf16.mxu0 %v1151
  %2144 = vmatmul.mubr.bf16.gmra.mxu0 %v1150
  %v2145 = vpop.f32.mrf.mxu0
  %v2146 = vadd.f32 %v2003, %v2145
  %v2147 = vpop.f32.mrf.mxu0
  %v2148 = vadd.f32 %v2005, %v2147
  %v2149 = vpop.f32.mrf.mxu0
  %v2150 = vadd.f32 %v2007, %v2149
  %v2151 = vpop.f32.mrf.mxu0
  %v2152 = vadd.f32 %v2009, %v2151
  %2153 = vmatprep.mubr.bf16.mxu0 %v1160
  %2154 = vmatmul.mubr.bf16.gmra.mxu0 %v1159
  %v2155 = vpop.f32.mrf.mxu0
  %v2156 = vadd.f32 %v2013, %v2155
  %v2157 = vpop.f32.mrf.mxu0
  %v2158 = vadd.f32 %v2015, %v2157
  %v2159 = vpop.f32.mrf.mxu0
  %v2160 = vadd.f32 %v2017, %v2159
  %v2161 = vpop.f32.mrf.mxu0
  %v2162 = vadd.f32 %v2019, %v2161
  %2163 = vdwg.mxu0
  %2164 = vmatprep.subr.bf16.mxu0 0
  %2165 = vmatpush1.bf16.msra.mxu0 0
  %2166 = vmatprep.subr.bf16.mxu0 0
  %2167 = vmatpush1.bf16.msra.mxu0 0
  %2168 = vmatprep.subr.bf16.mxu0 0
  %2169 = vmatpush1.bf16.msra.mxu0 0
  %2170 = vmatprep.subr.bf16.mxu0 0
  %2171 = vmatpush1.bf16.msra.mxu0 0
  %2172 = vmatprep.subr.bf16.mxu0 0
  %2173 = vmatpush1.bf16.msra.mxu0 0
  %2174 = vmatprep.subr.bf16.mxu0 0
  %2175 = vmatpush1.bf16.msra.mxu0 0
  %2176 = vmatprep.subr.bf16.mxu0 %v1557
  %2177 = vmatpush1.bf16.msra.mxu0 %v1556
  %2178 = vmatprep.subr.bf16.mxu0 %v1555
  %2179 = vmatpush1.bf16.msra.mxu0 %v1554
  %2180 = vmatprep.subr.bf16.mxu0 0
  %2181 = vmatpush2.bf16.msra.mxu0 0
  %2182 = vmatprep.subr.bf16.mxu0 0
  %2183 = vmatpush2.bf16.msra.mxu0 0
  %2184 = vmatprep.subr.bf16.mxu0 0
  %2185 = vmatpush2.bf16.msra.mxu0 0
  %2186 = vmatprep.subr.bf16.mxu0 0
  %2187 = vmatpush2.bf16.msra.mxu0 0
  %2188 = vmatprep.subr.bf16.mxu0 0
  %2189 = vmatpush2.bf16.msra.mxu0 0
  %2190 = vmatprep.subr.bf16.mxu0 0
  %2191 = vmatpush2.bf16.msra.mxu0 0
  %2192 = vmatprep.subr.bf16.mxu0 0
  %2193 = vmatpush2.bf16.msra.mxu0 0
  %2194 = vmatprep.subr.bf16.mxu0 0
  %2195 = vmatpush2.bf16.msra.mxu0 0
  %2196 = vmatprep.mubr.bf16.mxu0 0
  %2197 = vmatmul.mubr.bf16.gmra.mxu0 %v1560
  %v2198 = vpop.f32.mrf.mxu0
  %v2199 = vadd.f32 %v2056, %v2198
  %v2200 = vpop.f32.mrf.mxu0
  %v2201 = vadd.f32 %v2058, %v2200
  %v2202 = vpop.f32.mrf.mxu0
  %v2203 = vadd.f32 %v2060, %v2202
  %v2204 = vpop.f32.mrf.mxu0
  %v2205 = vadd.f32 %v2062, %v2204
  %2206 = vmatprep.mubr.bf16.mxu0 0
  %2207 = vmatmul.mubr.bf16.gmra.mxu0 %v1563
  %v2208 = vpop.f32.mrf.mxu0
  %v2209 = vadd.f32 %v2066, %v2208
  %v2210 = vpop.f32.mrf.mxu0
  %v2211 = vadd.f32 %v2068, %v2210
  %v2212 = vpop.f32.mrf.mxu0
  %v2213 = vadd.f32 %v2070, %v2212
  %v2214 = vpop.f32.mrf.mxu0
  %v2215 = vadd.f32 %v2072, %v2214
  %2216 = vmatprep.mubr.bf16.mxu0 0
  %2217 = vmatmul.mubr.bf16.gmra.mxu0 %v1566
  %v2218 = vpop.f32.mrf.mxu0
  %v2219 = vadd.f32 %v2076, %v2218
  %v2220 = vpop.f32.mrf.mxu0
  %v2221 = vadd.f32 %v2078, %v2220
  %v2222 = vpop.f32.mrf.mxu0
  %v2223 = vadd.f32 %v2080, %v2222
  %v2224 = vpop.f32.mrf.mxu0
  %v2225 = vadd.f32 %v2082, %v2224
  %2226 = vmatprep.mubr.bf16.mxu0 0
  %2227 = vmatmul.mubr.bf16.gmra.mxu0 %v1569
  %v2228 = vpop.f32.mrf.mxu0
  %v2229 = vadd.f32 %v2086, %v2228
  %v2230 = vpop.f32.mrf.mxu0
  %v2231 = vadd.f32 %v2088, %v2230
  %v2232 = vpop.f32.mrf.mxu0
  %v2233 = vadd.f32 %v2090, %v2232
  %v2234 = vpop.f32.mrf.mxu0
  %v2235 = vadd.f32 %v2092, %v2234
  %2236 = vmatprep.mubr.bf16.mxu0 0
  %2237 = vmatmul.mubr.bf16.gmra.mxu0 %v1572
  %v2238 = vpop.f32.mrf.mxu0
  %v2239 = vadd.f32 %v2096, %v2238
  %v2240 = vpop.f32.mrf.mxu0
  %v2241 = vadd.f32 %v2098, %v2240
  %v2242 = vpop.f32.mrf.mxu0
  %v2243 = vadd.f32 %v2100, %v2242
  %v2244 = vpop.f32.mrf.mxu0
  %v2245 = vadd.f32 %v2102, %v2244
  %2246 = vmatprep.mubr.bf16.mxu0 0
  %2247 = vmatmul.mubr.bf16.gmra.mxu0 %v1575
  %v2248 = vpop.f32.mrf.mxu0
  %v2249 = vadd.f32 %v2106, %v2248
  %v2250 = vpop.f32.mrf.mxu0
  %v2251 = vadd.f32 %v2108, %v2250
  %v2252 = vpop.f32.mrf.mxu0
  %v2253 = vadd.f32 %v2110, %v2252
  %v2254 = vpop.f32.mrf.mxu0
  %v2255 = vadd.f32 %v2112, %v2254
  %2256 = vmatprep.mubr.bf16.mxu0 0
  %2257 = vmatmul.mubr.bf16.gmra.mxu0 %v1578
  %v2258 = vpop.f32.mrf.mxu0
  %v2259 = vadd.f32 %v2116, %v2258
  %v2260 = vpop.f32.mrf.mxu0
  %v2261 = vadd.f32 %v2118, %v2260
  %v2262 = vpop.f32.mrf.mxu0
  %v2263 = vadd.f32 %v2120, %v2262
  %v2264 = vpop.f32.mrf.mxu0
  %v2265 = vadd.f32 %v2122, %v2264
  %2266 = vmatprep.mubr.bf16.mxu0 0
  %2267 = vmatmul.mubr.bf16.gmra.mxu0 %v1581
  %v2268 = vpop.f32.mrf.mxu0
  %v2269 = vadd.f32 %v2126, %v2268
  %v2270 = vpop.f32.mrf.mxu0
  %v2271 = vadd.f32 %v2128, %v2270
  %v2272 = vpop.f32.mrf.mxu0
  %v2273 = vadd.f32 %v2130, %v2272
  %v2274 = vpop.f32.mrf.mxu0
  %v2275 = vadd.f32 %v2132, %v2274
  %2276 = vmatprep.mubr.bf16.mxu0 0
  %2277 = vmatmul.mubr.bf16.gmra.mxu0 %v1584
  %v2278 = vpop.f32.mrf.mxu0
  %v2279 = vadd.f32 %v2136, %v2278
  %v2280 = vpop.f32.mrf.mxu0
  %v2281 = vadd.f32 %v2138, %v2280
  %v2282 = vpop.f32.mrf.mxu0
  %v2283 = vadd.f32 %v2140, %v2282
  %v2284 = vpop.f32.mrf.mxu0
  %v2285 = vadd.f32 %v2142, %v2284
  %2286 = vmatprep.mubr.bf16.mxu0 0
  %2287 = vmatmul.mubr.bf16.gmra.mxu0 %v1587
  %v2288 = vpop.f32.mrf.mxu0
  %v2289 = vadd.f32 %v2146, %v2288
  %v2290 = vpop.f32.mrf.mxu0
  %v2291 = vadd.f32 %v2148, %v2290
  %v2292 = vpop.f32.mrf.mxu0
  %v2293 = vadd.f32 %v2150, %v2292
  %v2294 = vpop.f32.mrf.mxu0
  %v2295 = vadd.f32 %v2152, %v2294
  %2296 = vmatprep.mubr.bf16.mxu0 0
  %2297 = vmatmul.mubr.bf16.gmra.mxu0 %v1590
  %v2298 = vpop.f32.mrf.mxu0
  %v2299 = vadd.f32 %v2156, %v2298
  %v2300 = vpop.f32.mrf.mxu0
  %v2301 = vadd.f32 %v2158, %v2300
  %v2302 = vpop.f32.mrf.mxu0
  %v2303 = vadd.f32 %v2160, %v2302
  %v2304 = vpop.f32.mrf.mxu0
  %v2305 = vadd.f32 %v2162, %v2304
  %2306 = vdwg.mxu0
  %2307 = vst [vmem:[%s5] sm:$0xff] %v2199
  %vm2308 = vcmask 556032
  %2309 = vst.msk [vmem:[%s5 + $0x8] sm:$0xff] %vm2308, %v2201
  %2310 = vst [vmem:[%s5 + $0x10] sm:$0xff] %v2203
  %2311 = vst.msk [vmem:[%s5 + $0x18] sm:$0xff] %vm2308, %v2205
  %2312 = vst [vmem:[%s5 + $0x20] sm:$0xff] %v2209
  %2313 = vst.msk [vmem:[%s5 + $0x28] sm:$0xff] %vm2308, %v2211
  %2314 = vst [vmem:[%s5 + $0x30] sm:$0xff] %v2213
  %2315 = vst.msk [vmem:[%s5 + $0x38] sm:$0xff] %vm2308, %v2215
  %2316 = vst [vmem:[%s5 + $0x40] sm:$0xff] %v2219
  %2317 = vst.msk [vmem:[%s5 + $0x48] sm:$0xff] %vm2308, %v2221
  %2318 = vst [vmem:[%s5 + $0x50] sm:$0xff] %v2223
  %2319 = vst.msk [vmem:[%s5 + $0x58] sm:$0xff] %vm2308, %v2225
  %2320 = vst [vmem:[%s5 + $0x60] sm:$0xff] %v2229
  %2321 = vst.msk [vmem:[%s5 + $0x68] sm:$0xff] %vm2308, %v2231
  %2322 = vst [vmem:[%s5 + $0x70] sm:$0xff] %v2233
  %2323 = vst.msk [vmem:[%s5 + $0x78] sm:$0xff] %vm2308, %v2235
  %2324 = vst [vmem:[%s5 + $0x80] sm:$0xff] %v2239
  %2325 = vst.msk [vmem:[%s5 + $0x88] sm:$0xff] %vm2308, %v2241
  %2326 = vst [vmem:[%s5 + $0x90] sm:$0xff] %v2243
  %2327 = vst.msk [vmem:[%s5 + $0x98] sm:$0xff] %vm2308, %v2245
  %2328 = vst [vmem:[%s5 + $0xa0] sm:$0xff] %v2249
  %2329 = vst.msk [vmem:[%s5 + $0xa8] sm:$0xff] %vm2308, %v2251
  %2330 = vst [vmem:[%s5 + $0xb0] sm:$0xff] %v2253
  %2331 = vst.msk [vmem:[%s5 + $0xb8] sm:$0xff] %vm2308, %v2255
  %2332 = vst [vmem:[%s5 + $0xc0] sm:$0xff] %v2259
  %2333 = vst.msk [vmem:[%s5 + $0xc8] sm:$0xff] %vm2308, %v2261
  %2334 = vst [vmem:[%s5 + $0xd0] sm:$0xff] %v2263
  %2335 = vst.msk [vmem:[%s5 + $0xd8] sm:$0xff] %vm2308, %v2265
  %2336 = vst [vmem:[%s5 + $0xe0] sm:$0xff] %v2269
  %2337 = vst.msk [vmem:[%s5 + $0xe8] sm:$0xff] %vm2308, %v2271
  %2338 = vst [vmem:[%s5 + $0xf0] sm:$0xff] %v2273
  %2339 = vst.msk [vmem:[%s5 + $0xf8] sm:$0xff] %vm2308, %v2275
  %2340 = vst [vmem:[%s5 + $0x100] sm:$0xff] %v2279
  %2341 = vst.msk [vmem:[%s5 + $0x108] sm:$0xff] %vm2308, %v2281
  %2342 = vst [vmem:[%s5 + $0x110] sm:$0xff] %v2283
  %2343 = vst.msk [vmem:[%s5 + $0x118] sm:$0xff] %vm2308, %v2285
  %2344 = vst [vmem:[%s5 + $0x120] sm:$0xff] %v2289
  %2345 = vst.msk [vmem:[%s5 + $0x128] sm:$0xff] %vm2308, %v2291
  %2346 = vst [vmem:[%s5 + $0x130] sm:$0xff] %v2293
  %2347 = vst.msk [vmem:[%s5 + $0x138] sm:$0xff] %vm2308, %v2295
  %2348 = vst [vmem:[%s5 + $0x140] sm:$0xff] %v2299
  %2349 = vst.msk [vmem:[%s5 + $0x148] sm:$0xff] %vm2308, %v2301
  %2350 = vst [vmem:[%s5 + $0x150] sm:$0xff] %v2303
  %2351 = vst.msk [vmem:[%s5 + $0x158] sm:$0xff] %vm2308, %v2305
  // Predicated region
  $region22: #{se_block.1} parent=0 // pred_check
    _
  $region23: #{se_block.1} parent=0 // pred_check_branch
    %2353 = sbr.rel (0) target = $region25
  $region24: #{se_block.1} parent=0 // pred_region
    _
  $region25: #{se_block.1} parent=0 // pred_fallthru
    _
  // Predicated region
  $region26: #{se_block.1} parent=0 // pred_check
    _
  $region27: #{se_block.1} parent=0 // pred_check_branch
    %2355 = sbr.rel (0) target = $region29
  $region28: #{se_block.1} parent=0 // pred_region
    _
  $region29: #{se_block.1} parent=0 // pred_fallthru
    _

</llo_original>
